<compile_context>
chip_gen: v5e
topology: v5e:2x2
jax: 0.10.0
libtpu: 0.0.40
codegen_flags: <defaults>
</compile_context>

<pallas_src>
import functools

import jax
import jax.numpy as jnp
import numpy as np
from jax.experimental import pallas as pl
from jax.experimental.pallas import tpu as pltpu


# ----------------------------------------------------------------------------
# Kernel A: norm1 + window attention (WB windows per grid step)
# ----------------------------------------------------------------------------
def _swin_attn_kernel(*refs, num_heads, head_dim, windows_per_block,
                      n_mask_windows, has_mask):
    if has_mask:
        (x_ref, g1_ref, be1_ref, wqkv_ref, bqkv_ref, wproj_ref, bproj_ref,
         rpb_ref, mask_ref, o_ref) = refs
    else:
        (x_ref, g1_ref, be1_ref, wqkv_ref, bqkv_ref, wproj_ref, bproj_ref,
         rpb_ref, o_ref) = refs
        mask_ref = None

    WB = windows_per_block
    H = num_heads
    D = head_dim
    N = x_ref.shape[1]
    C = x_ref.shape[2]

    # ---- LayerNorm (norm1) in f32 (elementwise work stays f32: v5e-friendly).
    x = x_ref[...].astype(jnp.float32)                               # (WB, N, C)
    mu = jnp.mean(x, axis=-1, keepdims=True)
    xc = x - mu
    var = jnp.mean(xc * xc, axis=-1, keepdims=True)
    xn = xc * jax.lax.rsqrt(var + 1e-5)
    xn = xn * g1_ref[...].reshape(1, 1, C) + be1_ref[...].reshape(1, 1, C)

    # ---- QKV projection: one big GEMM over all WB*N tokens (bf16 in, f32 acc).
    #      The q-scale is pre-folded into wqkv / bqkv by the wrapper.
    x_rows = xn.reshape(WB * N, C).astype(wqkv_ref.dtype)
    qkv = jnp.dot(x_rows, wqkv_ref[...], preferred_element_type=jnp.float32)
    qkv = qkv + bqkv_ref[...]                                        # (WB*N, 3C) f32
    qkv = qkv.reshape(WB, N, 3 * C)

    if has_mask:
        mask_f = mask_ref[...].astype(jnp.float32)                   # (nW, N, N)

    # ---- Per-head attention, batched over the WB windows in this block.
    #      Static lane slices per head; no (N, H, D) relayout.
    head_outs = []
    for h in range(H):
        q_h = qkv[:, :, h * D:(h + 1) * D].astype(wqkv_ref.dtype)            # (WB,N,D)
        k_h = qkv[:, :, C + h * D:C + (h + 1) * D].astype(wqkv_ref.dtype)
        v_h = qkv[:, :, 2 * C + h * D:2 * C + (h + 1) * D].astype(wqkv_ref.dtype)

        logits = jax.lax.dot_general(
            q_h, k_h, (((2,), (2,)), ((0,), (0,))),
            preferred_element_type=jnp.float32)                              # (WB,N,N)
        logits = logits + rpb_ref[h].astype(jnp.float32)[None]
        if has_mask:
            # windows in a block cycle through the nW mask windows
            # (WB is a multiple of nW and the block start is nW-aligned).
            logits = (logits.reshape(WB // n_mask_windows, n_mask_windows, N, N)
                      + mask_f[None]).reshape(WB, N, N)

        # numerically-stable softmax in f32; denominator on the EUP.
        logits = logits - jnp.max(logits, axis=-1, keepdims=True)
        p = jnp.exp(logits)
        p = p * pl.reciprocal(jnp.sum(p, axis=-1, keepdims=True), approx=True)
        # TODO(synk): attn_drop / proj_drop / DropPath are identity at p=0.0
        # (module defaults); dropout is not implemented.

        head_outs.append(jax.lax.dot_general(
            p.astype(wqkv_ref.dtype), v_h, (((2,), (1,)), ((0,), (0,))),
            preferred_element_type=jnp.float32))                             # (WB,N,D)

    out = jnp.concatenate(head_outs, axis=-1).reshape(WB * N, C)             # f32

    # ---- output projection
    y = jnp.dot(out.astype(wproj_ref.dtype), wproj_ref[...],
                preferred_element_type=jnp.float32) + bproj_ref[...]
    o_ref[...] = y.reshape(WB, N, C).astype(o_ref.dtype)


# ----------------------------------------------------------------------------
# Kernel B: norm2 + MLP (fc1 -> GELU -> fc2) + residual, row-blocked
# ----------------------------------------------------------------------------
def _mlp_residual_kernel(x_ref, g2_ref, be2_ref, w1_ref, b1_ref, w2_ref,
                         b2_ref, o_ref):
    x = x_ref[...].astype(jnp.float32)                    # (TM, C), residual carrier
    mu = jnp.mean(x, axis=-1, keepdims=True)
    xc = x - mu
    var = jnp.mean(xc * xc, axis=-1, keepdims=True)
    xn = xc * jax.lax.rsqrt(var + 1e-5)
    xn = xn * g2_ref[...] + be2_ref[...]

    h = jnp.dot(xn.astype(w1_ref.dtype), w1_ref[...],
                preferred_element_type=jnp.float32) + b1_ref[...]
    h = jax.nn.gelu(h, approximate=True)                  # f32, tanh -> EUP
    # TODO(synk): Mlp dropout is identity at drop=0.0; PyTorch's default nn.GELU
    # is erf-based, the tanh approximation is used here (and in the reference).
    y = jnp.dot(h.astype(w2_ref.dtype), w2_ref[...],
                preferred_element_type=jnp.float32) + b2_ref[...]
    o_ref[...] = (x + y).astype(o_ref.dtype)              # residual fused


# ----------------------------------------------------------------------------
# Block-size choosers (VMEM budget conservative enough for v7x; even grid pref)
# ----------------------------------------------------------------------------
def _prefer_even_grid(cands, total):
    even = [c for c in cands if (total // c) >= 2 and (total // c) % 2 == 0]
    if even:
        return max(even)
    multi = [c for c in cands if (total // c) >= 2]
    if multi:
        return max(multi)
    return max(cands)


def _choose_windows_per_block(num_windows, n_mask_windows, has_mask,
                              bytes_per_window, vmem_budget=8 << 20):
    step = n_mask_windows if has_mask else 1
    cap = max(step, vmem_budget // max(bytes_per_window, 1))
    cands = [w for w in range(step, num_windows + 1, step)
             if num_windows % w == 0 and w <= cap]
    if not cands:
        cands = [step]
    return _prefer_even_grid(cands, num_windows)


def _choose_rows_per_block(total_rows, bytes_per_row, vmem_budget=8 << 20):
    cap = max(8, vmem_budget // max(bytes_per_row, 1))
    cands = [t for t in range(8, total_rows + 1, 8)
             if total_rows % t == 0 and t <= cap]
    if not cands:
        cands = [total_rows]
    return _prefer_even_grid(cands, total_rows)


# ----------------------------------------------------------------------------
# pallas_call wrappers
# ----------------------------------------------------------------------------
def _window_attention_call(xw, gamma1, beta1, w_qkv, b_qkv, w_proj, b_proj,
                           rel_pos_bias, mask, *, num_heads, head_dim,
                           windows_per_block):
    B_, N, C = xw.shape
    H, D, WB = num_heads, head_dim, windows_per_block
    has_mask = mask is not None
    nW = mask.shape[0] if has_mask else 1
    assert B_ % WB == 0
    if has_mask:
        assert WB % nW == 0

    kernel = functools.partial(_swin_attn_kernel, num_heads=H, head_dim=D,
                               windows_per_block=WB, n_mask_windows=nW,
                               has_mask=has_mask)

    in_specs = [
        pl.BlockSpec((WB, N, C), lambda b: (b, 0, 0)),          # x windows
        pl.BlockSpec((1, C), lambda b: (0, 0)),                 # norm1 gamma
        pl.BlockSpec((1, C), lambda b: (0, 0)),                 # norm1 beta
        pl.BlockSpec((C, 3 * C), lambda b: (0, 0)),             # qkv weight (scale folded)
        pl.BlockSpec((1, 3 * C), lambda b: (0, 0)),             # qkv bias   (scale folded)
        pl.BlockSpec((C, C), lambda b: (0, 0)),                 # proj weight
        pl.BlockSpec((1, C), lambda b: (0, 0)),                 # proj bias
        pl.BlockSpec((H, N, N), lambda b: (0, 0, 0)),           # rel-pos bias (no broadcast)
    ]
    args = [xw, gamma1, beta1, w_qkv, b_qkv, w_proj, b_proj, rel_pos_bias]
    if has_mask:
        in_specs.append(pl.BlockSpec((nW, N, N), lambda b: (0, 0, 0)))
        args.append(mask)

    flops = int(B_ * (2 * N * C * 3 * C + 4 * H * N * N * D
                      + 2 * N * C * C + 10 * N * C))
    transc = int(B_ * (H * N * N + H * N + N))
    byts = int(2 * B_ * N * C * 2
               + 2 * (w_qkv.size + w_proj.size)
               + 4 * (b_qkv.size + b_proj.size + gamma1.size + beta1.size
                      + rel_pos_bias.size + (mask.size if has_mask else 0)))

    return pl.pallas_call(
        kernel,
        out_shape=jax.ShapeDtypeStruct((B_, N, C), xw.dtype),
        grid_spec=pltpu.PrefetchScalarGridSpec(
            num_scalar_prefetch=0,
            grid=(B_ // WB,),
            in_specs=in_specs,
            out_specs=pl.BlockSpec((WB, N, C), lambda b: (b, 0, 0))),
        compiler_params=pltpu.CompilerParams(dimension_semantics=("parallel",)),
        cost_estimate=pl.CostEstimate(flops=flops, transcendentals=transc,
                                      bytes_accessed=byts),
    )(*args)


def _mlp_residual_call(rows, gamma2, beta2, w_fc1, b_fc1, w_fc2, b_fc2, *,
                       rows_per_block):
    R, C = rows.shape
    Ch = w_fc1.shape[1]
    TM = rows_per_block
    assert R % TM == 0

    flops = int(R * (4 * C * Ch + 10 * C))
    transc = int(R * (Ch + 1))
    byts = int(2 * R * C * 4 + 2 * (w_fc1.size + w_fc2.size)
               + 4 * (b_fc1.size + b_fc2.size + gamma2.size + beta2.size))

    return pl.pallas_call(
        _mlp_residual_kernel,
        out_shape=jax.ShapeDtypeStruct((R, C), jnp.float32),
        grid_spec=pltpu.PrefetchScalarGridSpec(
            num_scalar_prefetch=0,
            grid=(R // TM,),
            in_specs=[
                pl.BlockSpec((TM, C), lambda r: (r, 0)),
                pl.BlockSpec((1, C), lambda r: (0, 0)),
                pl.BlockSpec((1, C), lambda r: (0, 0)),
                pl.BlockSpec((C, Ch), lambda r: (0, 0)),
                pl.BlockSpec((1, Ch), lambda r: (0, 0)),
                pl.BlockSpec((Ch, C), lambda r: (0, 0)),
                pl.BlockSpec((1, C), lambda r: (0, 0)),
            ],
            out_specs=pl.BlockSpec((TM, C), lambda r: (r, 0))),
        compiler_params=pltpu.CompilerParams(dimension_semantics=("parallel",)),
        cost_estimate=pl.CostEstimate(flops=flops, transcendentals=transc,
                                      bytes_accessed=byts),
    )(rows, gamma2, beta2, w_fc1, b_fc1, w_fc2, b_fc2)


# ----------------------------------------------------------------------------
# Window / mask glue (pure index shuffles, done once in JAX / numpy)
# ----------------------------------------------------------------------------
def window_partition(x4, ws):
    B, Hs, Ws_, C = x4.shape
    x = x4.reshape(B, Hs // ws, ws, Ws_ // ws, ws, C)
    return x.transpose(0, 1, 3, 2, 4, 5).reshape(-1, ws * ws, C)


def window_reverse(wins, ws, Hs, Ws_):
    C = wins.shape[-1]
    B = wins.shape[0] // ((Hs // ws) * (Ws_ // ws))
    x = wins.reshape(B, Hs // ws, Ws_ // ws, ws, ws, C)
    return x.transpose(0, 1, 3, 2, 4, 5).reshape(B, Hs, Ws_, C)


def make_shift_attn_mask(Hs, Ws_, ws, ss):
    """Replicates the PyTorch shifted-window attention mask. Returns (nW, N, N) f32."""
    img = np.zeros((Hs, Ws_), dtype=np.int32)
    h_slices = (slice(0, -ws), slice(-ws, -ss), slice(-ss, None))
    w_slices = (slice(0, -ws), slice(-ws, -ss), slice(-ss, None))
    cnt = 0
    for h in h_slices:
        for w in w_slices:
            img[h, w] = cnt
            cnt += 1
    mw = img.reshape(Hs // ws, ws, Ws_ // ws, ws).transpose(0, 2, 1, 3)
    mw = mw.reshape(-1, ws * ws)
    diff = mw[:, None, :] - mw[:, :, None]
    return jnp.asarray(np.where(diff != 0, -100.0, 0.0).astype(np.float32))


def make_relative_position_index(window_size):
    """Replicates the PyTorch relative_position_index buffer (numpy glue)."""
    Wh, Ww = window_size
    coords = np.stack(np.meshgrid(np.arange(Wh), np.arange(Ww), indexing='ij'))
    coords_flatten = coords.reshape(2, -1)
    rel = coords_flatten[:, :, None] - coords_flatten[:, None, :]
    rel = rel.transpose(1, 2, 0).copy()
    rel[:, :, 0] += Wh - 1
    rel[:, :, 1] += Ww - 1
    rel[:, :, 0] *= 2 * Ww - 1
    return rel.sum(-1).astype(np.int32)


# ----------------------------------------------------------------------------
# Full SwinTransformerBlock forward
# ----------------------------------------------------------------------------
def swin_transformer_block_forward(x, params, *, input_resolution, window_size,
                                   shift_size, num_heads,
                                   compute_dtype=jnp.bfloat16):
    B, L, C = x.shape
    Hs, Ws_ = input_resolution
    assert L == Hs * Ws_
    ws, ss = window_size, shift_size
    if min(Hs, Ws_) <= ws:                       # same guard as the PyTorch module
        ss = 0
        ws = min(Hs, Ws_)
    N = ws * ws
    nW = (Hs // ws) * (Ws_ // ws)
    H = num_heads
    D = C // H
    scale = D ** (-0.5)
    f32 = jnp.float32
    assert params['rel_pos_bias'].shape == (H, N, N)

    # Fold q-scale into the qkv projection (removes an in-kernel multiply).
    qscale = jnp.concatenate([jnp.full((C,), scale, f32), jnp.ones((2 * C,), f32)])
    w_qkv = (params['w_qkv'].astype(f32) * qscale[None, :]).astype(compute_dtype)
    b_qkv = (params['b_qkv'].astype(f32) * qscale).reshape(1, 3 * C)
    w_proj = params['w_proj'].astype(compute_dtype)
    b_proj = params['b_proj'].astype(f32).reshape(1, C)
    gamma1 = params['gamma1'].astype(f32).reshape(1, C)
    beta1 = params['beta1'].astype(f32).reshape(1, C)
    rel_pos_bias = params['rel_pos_bias'].astype(f32)

    mask = make_shift_attn_mask(Hs, Ws_, ws, ss) if ss > 0 else None

    # ---- attention branch (norm1 is per-token, so it commutes with the
    #      roll/partition permutations and is fused inside the kernel) ----
    shortcut = x
    xs = x.astype(compute_dtype).reshape(B, Hs, Ws_, C)
    if ss > 0:
        xs = jnp.roll(xs, shift=(-ss, -ss), axis=(1, 2))
    xw = window_partition(xs, ws)                               # (B*nW, N, C) bf16
    B_ = xw.shape[0]

    bytes_per_window = (2 * 2 * N * C * 2        # bf16 in+out blocks, double-buffered
                        + N * 3 * C * 4          # f32 qkv intermediate
                        + 2 * N * N * 4)         # f32 logits / probs
    WB = _choose_windows_per_block(B_, nW, mask is not None, bytes_per_window)

    attn_win = _window_attention_call(
        xw, gamma1, beta1, w_qkv, b_qkv, w_proj, b_proj, rel_pos_bias, mask,
        num_heads=H, head_dim=D, windows_per_block=WB)

    xr = window_reverse(attn_win, ws, Hs, Ws_)
    if ss > 0:
        xr = jnp.roll(xr, shift=(ss, ss), axis=(1, 2))
    x1 = shortcut + xr.reshape(B, L, C).astype(f32)             # first residual

    # ---- MLP branch (norm2 + fc1 + GELU + fc2 + residual, one kernel) ----
    w_fc1 = params['w_fc1'].astype(compute_dtype)
    w_fc2 = params['w_fc2'].astype(compute_dtype)
    Ch = w_fc1.shape[1]
    b_fc1 = params['b_fc1'].astype(f32).reshape(1, Ch)
    b_fc2 = params['b_fc2'].astype(f32).reshape(1, C)
    gamma2 = params['gamma2'].astype(f32).reshape(1, C)
    beta2 = params['beta2'].astype(f32).reshape(1, C)

    rows = x1.reshape(B * L, C)
    bytes_per_row = 2 * 2 * C * 4 + Ch * 4
    TM = _choose_rows_per_block(B * L, bytes_per_row)

    y = _mlp_residual_call(rows, gamma2, beta2, w_fc1, b_fc1, w_fc2, b_fc2,
                           rows_per_block=TM)
    return y.reshape(B, L, C)


# ----------------------------------------------------------------------------
# Pure-JAX f32 reference (mirrors the PyTorch forward)
# ----------------------------------------------------------------------------
def reference_swin_block(x, p, *, input_resolution, window_size, shift_size,
                         num_heads):
    B, L, C = x.shape
    Hs, Ws_ = input_resolution
    ws, ss = window_size, shift_size
    if min(Hs, Ws_) <= ws:
        ss = 0
        ws = min(Hs, Ws_)
    N = ws * ws
    H = num_heads
    D = C // H
    scale = D ** (-0.5)

    def ln(z, g, b):
        mu = z.mean(-1, keepdims=True)
        var = ((z - mu) ** 2).mean(-1, keepdims=True)
        return (z - mu) * jax.lax.rsqrt(var + 1e-5) * g + b

    shortcut = x
    z = ln(x, p['gamma1'], p['beta1']).reshape(B, Hs, Ws_, C)
    if ss > 0:
        z = jnp.roll(z, shift=(-ss, -ss), axis=(1, 2))
    zw = window_partition(z, ws)
    B_ = zw.shape[0]
    qkv = zw @ p['w_qkv'] + p['b_qkv']
    qkv = qkv.reshape(B_, N, 3, H, D).transpose(2, 0, 3, 1, 4)
    q, k, v = qkv[0] * scale, qkv[1], qkv[2]
    attn = jnp.einsum('bhnd,bhmd->bhnm', q, k)
    attn = attn + p['rel_pos_bias'][None]
    if ss > 0:
        mask = make_shift_attn_mask(Hs, Ws_, ws, ss)
        nW = mask.shape[0]
        attn = attn.reshape(B_ // nW, nW, H, N, N) + mask[None, :, None]
        attn = attn.reshape(B_, H, N, N)
    attn = jax.nn.softmax(attn, axis=-1)
    aw = jnp.einsum('bhnm,bhmd->bhnd', attn, v).transpose(0, 2, 1, 3)
    aw = aw.reshape(B_, N, C) @ p['w_proj'] + p['b_proj']
    zr = window_reverse(aw, ws, Hs, Ws_)
    if ss > 0:
        zr = jnp.roll(zr, shift=(ss, ss), axis=(1, 2))
    x1 = shortcut + zr.reshape(B, L, C)
    z2 = ln(x1, p['gamma2'], p['beta2'])
    y = jax.nn.gelu(z2 @ p['w_fc1'] + p['b_fc1'], approximate=True)
    return x1 + (y @ p['w_fc2'] + p['b_fc2'])


# ----------------------------------------------------------------------------
if __name__ == "__main__":
    # Small configuration consistent with the module: dim = embed_dim = 32,
    # input_resolution 8x8 (L=64), window_size=4, shifted block (shift=2), B=2.
    C = 32
    num_heads = 4
    Hs = Ws_ = 8
    L = Hs * Ws_
    B = 2
    window_size = 4
    shift_size = (1 % 2) * window_size // 2       # position=1 -> shift 2
    mlp_hidden = int(C * 4.0)
    N = window_size * window_size

    key = jax.random.PRNGKey(0)
    ks = jax.random.split(key, 16)

    x = jax.random.normal(ks[0], (B, L, C), jnp.float32)

    table_size = (2 * window_size - 1) * (2 * window_size - 1)
    rel_table = 0.02 * jax.random.truncated_normal(
        ks[1], -2.0, 2.0, (table_size, num_heads), jnp.float32)
    rp_index = jnp.asarray(make_relative_position_index((window_size, window_size)))
    rel_pos_bias = rel_table[rp_index.reshape(-1)].reshape(
        N, N, num_heads).transpose(2, 0, 1)

    params = {
        'gamma1': 1.0 + 0.05 * jax.random.normal(ks[2], (C,), jnp.float32),
        'beta1': 0.05 * jax.random.normal(ks[3], (C,), jnp.float32),
        'w_qkv': 0.05 * jax.random.normal(ks[4], (C, 3 * C), jnp.float32),
        'b_qkv': 0.05 * jax.random.normal(ks[5], (3 * C,), jnp.float32),
        'w_proj': 0.05 * jax.random.normal(ks[6], (C, C), jnp.float32),
        'b_proj': 0.05 * jax.random.normal(ks[7], (C,), jnp.float32),
        'rel_pos_bias': rel_pos_bias,
        'gamma2': 1.0 + 0.05 * jax.random.normal(ks[8], (C,), jnp.float32),
        'beta2': 0.05 * jax.random.normal(ks[9], (C,), jnp.float32),
        'w_fc1': 0.05 * jax.random.normal(ks[10], (C, mlp_hidden), jnp.float32),
        'b_fc1': 0.05 * jax.random.normal(ks[11], (mlp_hidden,), jnp.float32),
        'w_fc2': 0.05 * jax.random.normal(ks[12], (mlp_hidden, C), jnp.float32),
        'b_fc2': 0.05 * jax.random.normal(ks[13], (C,), jnp.float32),
    }

    # Exercise both the shifted (mask) path and the non-shifted path.
    for ss in (shift_size, 0):
        out = swin_transformer_block_forward(
            x, params, input_resolution=(Hs, Ws_), window_size=window_size,
            shift_size=ss, num_heads=num_heads)
        out = jax.block_until_ready(out)
        ref = reference_swin_block(
            x, params, input_resolution=(Hs, Ws_), window_size=window_size,
            shift_size=ss, num_heads=num_heads)
        # Tolerance loosened vs the f32 reference because MXU operands are
        # deliberately bf16 and the softmax denominator uses the approx EUP recip.
        np.testing.assert_allclose(np.asarray(out), np.asarray(ref),
                                   rtol=2e-2, atol=2e-2)

    print("KERNEL_OK")
</pallas_src>

<mosaic_0001>
module attributes {stable_mosaic.version = 11 : i64} {
  func.func @_swin_attn_kernel(%arg0: i32, %arg1: memref<4x16x32xbf16, #tpu.memory_space<vmem>>, %arg2: memref<1x32xf32, #tpu.memory_space<vmem>>, %arg3: memref<1x32xf32, #tpu.memory_space<vmem>>, %arg4: memref<32x96xbf16, #tpu.memory_space<vmem>>, %arg5: memref<1x96xf32, #tpu.memory_space<vmem>>, %arg6: memref<32x32xbf16, #tpu.memory_space<vmem>>, %arg7: memref<1x32xf32, #tpu.memory_space<vmem>>, %arg8: memref<4x16x16xf32, #tpu.memory_space<vmem>>, %arg9: memref<4x16x16xf32, #tpu.memory_space<vmem>>, %arg10: memref<4x16x32xbf16, #tpu.memory_space<vmem>>) attributes {dimension_semantics = [#tpu.dimension_semantics<parallel>], iteration_bounds = array<i64: 2>, scalar_prefetch = 0 : i64, scratch_operands = 0 : i64, tpu.core_type = #tpu.core_type<tc>, window_params = [{transform_indices = @transform_0, window_bounds = array<i64: 4, 16, 32>}, {pipeline_mode = #tpu.pipeline_mode<synchronous>, transform_indices = @transform_1, window_bounds = array<i64: 1, 32>}, {pipeline_mode = #tpu.pipeline_mode<synchronous>, transform_indices = @transform_2, window_bounds = array<i64: 1, 32>}, {pipeline_mode = #tpu.pipeline_mode<synchronous>, transform_indices = @transform_3, window_bounds = array<i64: 32, 96>}, {pipeline_mode = #tpu.pipeline_mode<synchronous>, transform_indices = @transform_4, window_bounds = array<i64: 1, 96>}, {pipeline_mode = #tpu.pipeline_mode<synchronous>, transform_indices = @transform_5, window_bounds = array<i64: 32, 32>}, {pipeline_mode = #tpu.pipeline_mode<synchronous>, transform_indices = @transform_6, window_bounds = array<i64: 1, 32>}, {pipeline_mode = #tpu.pipeline_mode<synchronous>, transform_indices = @transform_7, window_bounds = array<i64: 4, 16, 16>}, {pipeline_mode = #tpu.pipeline_mode<synchronous>, transform_indices = @transform_8, window_bounds = array<i64: 4, 16, 16>}, {transform_indices = @transform_9, window_bounds = array<i64: 4, 16, 32>}]} {
    %c0 = arith.constant 0 : index
    %c0_0 = arith.constant 0 : index
    %c0_1 = arith.constant 0 : index
    %0 = vector.load %arg1[%c0, %c0_0, %c0_1] : memref<4x16x32xbf16, #tpu.memory_space<vmem>>, vector<4x16x32xbf16>
    %1 = arith.extf %0 : vector<4x16x32xbf16> to vector<4x16x32xf32>
    %cst = arith.constant dense<0.000000e+00> : vector<4x16xf32>
    %2 = vector.multi_reduction <add>, %1, %cst [2] : vector<4x16x32xf32> to vector<4x16xf32>
    %3 = vector.shape_cast %2 : vector<4x16xf32> to vector<4x16x1xf32>
    %cst_2 = arith.constant 3.200000e+01 : f32
    %4 = vector.broadcast %cst_2 : f32 to vector<4x16x1xf32>
    %5 = arith.divf %3, %4 : vector<4x16x1xf32>
    %6 = vector.broadcast %5 : vector<4x16x1xf32> to vector<4x16x32xf32>
    %7 = arith.subf %1, %6 : vector<4x16x32xf32>
    %8 = arith.mulf %7, %7 : vector<4x16x32xf32>
    %cst_3 = arith.constant dense<0.000000e+00> : vector<4x16xf32>
    %9 = vector.multi_reduction <add>, %8, %cst_3 [2] : vector<4x16x32xf32> to vector<4x16xf32>
    %10 = vector.shape_cast %9 : vector<4x16xf32> to vector<4x16x1xf32>
    %cst_4 = arith.constant 3.200000e+01 : f32
    %11 = vector.broadcast %cst_4 : f32 to vector<4x16x1xf32>
    %12 = arith.divf %10, %11 : vector<4x16x1xf32>
    %cst_5 = arith.constant 9.99999974E-6 : f32
    %13 = vector.broadcast %cst_5 : f32 to vector<4x16x1xf32>
    %14 = arith.addf %12, %13 : vector<4x16x1xf32>
    %15 = math.rsqrt %14 : vector<4x16x1xf32>
    %16 = vector.broadcast %15 : vector<4x16x1xf32> to vector<4x16x32xf32>
    %17 = arith.mulf %7, %16 : vector<4x16x32xf32>
    %c0_6 = arith.constant 0 : index
    %c0_7 = arith.constant 0 : index
    %18 = vector.load %arg2[%c0_6, %c0_7] : memref<1x32xf32, #tpu.memory_space<vmem>>, vector<1x32xf32>
    %19 = vector.shape_cast %18 : vector<1x32xf32> to vector<1x1x32xf32>
    %20 = vector.broadcast %19 : vector<1x1x32xf32> to vector<4x16x32xf32>
    %21 = arith.mulf %17, %20 : vector<4x16x32xf32>
    %c0_8 = arith.constant 0 : index
    %c0_9 = arith.constant 0 : index
    %22 = vector.load %arg3[%c0_8, %c0_9] : memref<1x32xf32, #tpu.memory_space<vmem>>, vector<1x32xf32>
    %23 = vector.shape_cast %22 : vector<1x32xf32> to vector<1x1x32xf32>
    %24 = vector.broadcast %23 : vector<1x1x32xf32> to vector<4x16x32xf32>
    %25 = arith.addf %21, %24 : vector<4x16x32xf32>
    %26 = vector.shape_cast %25 : vector<4x16x32xf32> to vector<64x32xf32>
    %27 = arith.truncf %26 : vector<64x32xf32> to vector<64x32xbf16>
    %c0_10 = arith.constant 0 : index
    %c0_11 = arith.constant 0 : index
    %28 = vector.load %arg4[%c0_10, %c0_11] : memref<32x96xbf16, #tpu.memory_space<vmem>>, vector<32x96xbf16>
    %cst_12 = arith.constant dense<0.000000e+00> : vector<64x96xf32>
    %29 = tpu.matmul %27, %28, %cst_12 {dimension_numbers = #tpu.dot_dimension_numbers<[1], [0], [0], [1], [0, 0, 1, 1], [], []>} : vector<64x32xbf16>, vector<32x96xbf16>, vector<64x96xf32> -> vector<64x96xf32>
    %c0_13 = arith.constant 0 : index
    %c0_14 = arith.constant 0 : index
    %30 = vector.load %arg5[%c0_13, %c0_14] : memref<1x96xf32, #tpu.memory_space<vmem>>, vector<1x96xf32>
    %31 = vector.broadcast %30 : vector<1x96xf32> to vector<64x96xf32>
    %32 = arith.addf %29, %31 : vector<64x96xf32>
    %33 = vector.shape_cast %32 : vector<64x96xf32> to vector<4x16x96xf32>
    %c0_15 = arith.constant 0 : index
    %c0_16 = arith.constant 0 : index
    %c0_17 = arith.constant 0 : index
    %34 = vector.load %arg9[%c0_15, %c0_16, %c0_17] : memref<4x16x16xf32, #tpu.memory_space<vmem>>, vector<4x16x16xf32>
    %35 = vector.extract_strided_slice %33 {offsets = [0, 0, 0], sizes = [4, 16, 8], strides = [1, 1, 1]} : vector<4x16x96xf32> to vector<4x16x8xf32>
    %36 = arith.truncf %35 : vector<4x16x8xf32> to vector<4x16x8xbf16>
    %37 = vector.extract_strided_slice %33 {offsets = [0, 0, 32], sizes = [4, 16, 8], strides = [1, 1, 1]} : vector<4x16x96xf32> to vector<4x16x8xf32>
    %38 = arith.truncf %37 : vector<4x16x8xf32> to vector<4x16x8xbf16>
    %39 = vector.extract_strided_slice %33 {offsets = [0, 0, 64], sizes = [4, 16, 8], strides = [1, 1, 1]} : vector<4x16x96xf32> to vector<4x16x8xf32>
    %40 = arith.truncf %39 : vector<4x16x8xf32> to vector<4x16x8xbf16>
    %cst_18 = arith.constant dense<0.000000e+00> : vector<4x16x16xf32>
    %41 = tpu.matmul %36, %38, %cst_18 {dimension_numbers = #tpu.dot_dimension_numbers<[2], [2], [1], [1], [0, 0, 0, 1, 1, 1], [0], [0]>} : vector<4x16x8xbf16>, vector<4x16x8xbf16>, vector<4x16x16xf32> -> vector<4x16x16xf32>
    %c0_19 = arith.constant 0 : index
    %c0_20 = arith.constant 0 : index
    %c0_21 = arith.constant 0 : index
    %42 = vector.load %arg8[%c0_19, %c0_20, %c0_21] : memref<4x16x16xf32, #tpu.memory_space<vmem>>, vector<1x16x16xf32>
    %43 = vector.shape_cast %42 : vector<1x16x16xf32> to vector<16x16xf32>
    %44 = vector.shape_cast %43 : vector<16x16xf32> to vector<1x16x16xf32>
    %45 = vector.broadcast %44 : vector<1x16x16xf32> to vector<4x16x16xf32>
    %46 = arith.addf %41, %45 : vector<4x16x16xf32>
    %47 = vector.shape_cast %46 : vector<4x16x16xf32> to vector<1x4x16x16xf32>
    %48 = vector.shape_cast %34 : vector<4x16x16xf32> to vector<1x4x16x16xf32>
    %49 = arith.addf %47, %48 : vector<1x4x16x16xf32>
    %50 = vector.shape_cast %49 : vector<1x4x16x16xf32> to vector<4x16x16xf32>
    %cst_22 = arith.constant dense<0xFF800000> : vector<4x16xf32>
    %51 = vector.multi_reduction <maximumf>, %50, %cst_22 [2] : vector<4x16x16xf32> to vector<4x16xf32>
    %52 = vector.shape_cast %51 : vector<4x16xf32> to vector<4x16x1xf32>
    %53 = vector.broadcast %52 : vector<4x16x1xf32> to vector<4x16x16xf32>
    %54 = arith.subf %50, %53 : vector<4x16x16xf32>
    %55 = math.exp %54 : vector<4x16x16xf32>
    %cst_23 = arith.constant dense<0.000000e+00> : vector<4x16xf32>
    %56 = vector.multi_reduction <add>, %55, %cst_23 [2] : vector<4x16x16xf32> to vector<4x16xf32>
    %57 = vector.shape_cast %56 : vector<4x16xf32> to vector<4x16x1xf32>
    %58 = tpu.reciprocal %57 {approx = true} : vector<4x16x1xf32> -> vector<4x16x1xf32>
    %59 = vector.broadcast %58 : vector<4x16x1xf32> to vector<4x16x16xf32>
    %60 = arith.mulf %55, %59 : vector<4x16x16xf32>
    %61 = arith.truncf %60 : vector<4x16x16xf32> to vector<4x16x16xbf16>
    %cst_24 = arith.constant dense<0.000000e+00> : vector<4x16x8xf32>
    %62 = tpu.matmul %61, %40, %cst_24 {dimension_numbers = #tpu.dot_dimension_numbers<[2], [1], [1], [2], [0, 0, 0, 1, 1, 2], [0], [0]>} : vector<4x16x16xbf16>, vector<4x16x8xbf16>, vector<4x16x8xf32> -> vector<4x16x8xf32>
    %63 = vector.extract_strided_slice %33 {offsets = [0, 0, 8], sizes = [4, 16, 8], strides = [1, 1, 1]} : vector<4x16x96xf32> to vector<4x16x8xf32>
    %64 = arith.truncf %63 : vector<4x16x8xf32> to vector<4x16x8xbf16>
    %65 = vector.extract_strided_slice %33 {offsets = [0, 0, 40], sizes = [4, 16, 8], strides = [1, 1, 1]} : vector<4x16x96xf32> to vector<4x16x8xf32>
    %66 = arith.truncf %65 : vector<4x16x8xf32> to vector<4x16x8xbf16>
    %67 = vector.extract_strided_slice %33 {offsets = [0, 0, 72], sizes = [4, 16, 8], strides = [1, 1, 1]} : vector<4x16x96xf32> to vector<4x16x8xf32>
    %68 = arith.truncf %67 : vector<4x16x8xf32> to vector<4x16x8xbf16>
    %cst_25 = arith.constant dense<0.000000e+00> : vector<4x16x16xf32>
    %69 = tpu.matmul %64, %66, %cst_25 {dimension_numbers = #tpu.dot_dimension_numbers<[2], [2], [1], [1], [0, 0, 0, 1, 1, 1], [0], [0]>} : vector<4x16x8xbf16>, vector<4x16x8xbf16>, vector<4x16x16xf32> -> vector<4x16x16xf32>
    %c1 = arith.constant 1 : index
    %c0_26 = arith.constant 0 : index
    %c0_27 = arith.constant 0 : index
    %70 = vector.load %arg8[%c1, %c0_26, %c0_27] : memref<4x16x16xf32, #tpu.memory_space<vmem>>, vector<1x16x16xf32>
    %71 = vector.shape_cast %70 : vector<1x16x16xf32> to vector<16x16xf32>
    %72 = vector.shape_cast %71 : vector<16x16xf32> to vector<1x16x16xf32>
    %73 = vector.broadcast %72 : vector<1x16x16xf32> to vector<4x16x16xf32>
    %74 = arith.addf %69, %73 : vector<4x16x16xf32>
    %75 = vector.shape_cast %74 : vector<4x16x16xf32> to vector<1x4x16x16xf32>
    %76 = vector.shape_cast %34 : vector<4x16x16xf32> to vector<1x4x16x16xf32>
    %77 = arith.addf %75, %76 : vector<1x4x16x16xf32>
    %78 = vector.shape_cast %77 : vector<1x4x16x16xf32> to vector<4x16x16xf32>
    %cst_28 = arith.constant dense<0xFF800000> : vector<4x16xf32>
    %79 = vector.multi_reduction <maximumf>, %78, %cst_28 [2] : vector<4x16x16xf32> to vector<4x16xf32>
    %80 = vector.shape_cast %79 : vector<4x16xf32> to vector<4x16x1xf32>
    %81 = vector.broadcast %80 : vector<4x16x1xf32> to vector<4x16x16xf32>
    %82 = arith.subf %78, %81 : vector<4x16x16xf32>
    %83 = math.exp %82 : vector<4x16x16xf32>
    %cst_29 = arith.constant dense<0.000000e+00> : vector<4x16xf32>
    %84 = vector.multi_reduction <add>, %83, %cst_29 [2] : vector<4x16x16xf32> to vector<4x16xf32>
    %85 = vector.shape_cast %84 : vector<4x16xf32> to vector<4x16x1xf32>
    %86 = tpu.reciprocal %85 {approx = true} : vector<4x16x1xf32> -> vector<4x16x1xf32>
    %87 = vector.broadcast %86 : vector<4x16x1xf32> to vector<4x16x16xf32>
    %88 = arith.mulf %83, %87 : vector<4x16x16xf32>
    %89 = arith.truncf %88 : vector<4x16x16xf32> to vector<4x16x16xbf16>
    %cst_30 = arith.constant dense<0.000000e+00> : vector<4x16x8xf32>
    %90 = tpu.matmul %89, %68, %cst_30 {dimension_numbers = #tpu.dot_dimension_numbers<[2], [1], [1], [2], [0, 0, 0, 1, 1, 2], [0], [0]>} : vector<4x16x16xbf16>, vector<4x16x8xbf16>, vector<4x16x8xf32> -> vector<4x16x8xf32>
    %91 = vector.extract_strided_slice %33 {offsets = [0, 0, 16], sizes = [4, 16, 8], strides = [1, 1, 1]} : vector<4x16x96xf32> to vector<4x16x8xf32>
    %92 = arith.truncf %91 : vector<4x16x8xf32> to vector<4x16x8xbf16>
    %93 = vector.extract_strided_slice %33 {offsets = [0, 0, 48], sizes = [4, 16, 8], strides = [1, 1, 1]} : vector<4x16x96xf32> to vector<4x16x8xf32>
    %94 = arith.truncf %93 : vector<4x16x8xf32> to vector<4x16x8xbf16>
    %95 = vector.extract_strided_slice %33 {offsets = [0, 0, 80], sizes = [4, 16, 8], strides = [1, 1, 1]} : vector<4x16x96xf32> to vector<4x16x8xf32>
    %96 = arith.truncf %95 : vector<4x16x8xf32> to vector<4x16x8xbf16>
    %cst_31 = arith.constant dense<0.000000e+00> : vector<4x16x16xf32>
    %97 = tpu.matmul %92, %94, %cst_31 {dimension_numbers = #tpu.dot_dimension_numbers<[2], [2], [1], [1], [0, 0, 0, 1, 1, 1], [0], [0]>} : vector<4x16x8xbf16>, vector<4x16x8xbf16>, vector<4x16x16xf32> -> vector<4x16x16xf32>
    %c2 = arith.constant 2 : index
    %c0_32 = arith.constant 0 : index
    %c0_33 = arith.constant 0 : index
    %98 = vector.load %arg8[%c2, %c0_32, %c0_33] : memref<4x16x16xf32, #tpu.memory_space<vmem>>, vector<1x16x16xf32>
    %99 = vector.shape_cast %98 : vector<1x16x16xf32> to vector<16x16xf32>
    %100 = vector.shape_cast %99 : vector<16x16xf32> to vector<1x16x16xf32>
    %101 = vector.broadcast %100 : vector<1x16x16xf32> to vector<4x16x16xf32>
    %102 = arith.addf %97, %101 : vector<4x16x16xf32>
    %103 = vector.shape_cast %102 : vector<4x16x16xf32> to vector<1x4x16x16xf32>
    %104 = vector.shape_cast %34 : vector<4x16x16xf32> to vector<1x4x16x16xf32>
    %105 = arith.addf %103, %104 : vector<1x4x16x16xf32>
    %106 = vector.shape_cast %105 : vector<1x4x16x16xf32> to vector<4x16x16xf32>
    %cst_34 = arith.constant dense<0xFF800000> : vector<4x16xf32>
    %107 = vector.multi_reduction <maximumf>, %106, %cst_34 [2] : vector<4x16x16xf32> to vector<4x16xf32>
    %108 = vector.shape_cast %107 : vector<4x16xf32> to vector<4x16x1xf32>
    %109 = vector.broadcast %108 : vector<4x16x1xf32> to vector<4x16x16xf32>
    %110 = arith.subf %106, %109 : vector<4x16x16xf32>
    %111 = math.exp %110 : vector<4x16x16xf32>
    %cst_35 = arith.constant dense<0.000000e+00> : vector<4x16xf32>
    %112 = vector.multi_reduction <add>, %111, %cst_35 [2] : vector<4x16x16xf32> to vector<4x16xf32>
    %113 = vector.shape_cast %112 : vector<4x16xf32> to vector<4x16x1xf32>
    %114 = tpu.reciprocal %113 {approx = true} : vector<4x16x1xf32> -> vector<4x16x1xf32>
    %115 = vector.broadcast %114 : vector<4x16x1xf32> to vector<4x16x16xf32>
    %116 = arith.mulf %111, %115 : vector<4x16x16xf32>
    %117 = arith.truncf %116 : vector<4x16x16xf32> to vector<4x16x16xbf16>
    %cst_36 = arith.constant dense<0.000000e+00> : vector<4x16x8xf32>
    %118 = tpu.matmul %117, %96, %cst_36 {dimension_numbers = #tpu.dot_dimension_numbers<[2], [1], [1], [2], [0, 0, 0, 1, 1, 2], [0], [0]>} : vector<4x16x16xbf16>, vector<4x16x8xbf16>, vector<4x16x8xf32> -> vector<4x16x8xf32>
    %119 = vector.extract_strided_slice %33 {offsets = [0, 0, 24], sizes = [4, 16, 8], strides = [1, 1, 1]} : vector<4x16x96xf32> to vector<4x16x8xf32>
    %120 = arith.truncf %119 : vector<4x16x8xf32> to vector<4x16x8xbf16>
    %121 = vector.extract_strided_slice %33 {offsets = [0, 0, 56], sizes = [4, 16, 8], strides = [1, 1, 1]} : vector<4x16x96xf32> to vector<4x16x8xf32>
    %122 = arith.truncf %121 : vector<4x16x8xf32> to vector<4x16x8xbf16>
    %123 = vector.extract_strided_slice %33 {offsets = [0, 0, 88], sizes = [4, 16, 8], strides = [1, 1, 1]} : vector<4x16x96xf32> to vector<4x16x8xf32>
    %124 = arith.truncf %123 : vector<4x16x8xf32> to vector<4x16x8xbf16>
    %cst_37 = arith.constant dense<0.000000e+00> : vector<4x16x16xf32>
    %125 = tpu.matmul %120, %122, %cst_37 {dimension_numbers = #tpu.dot_dimension_numbers<[2], [2], [1], [1], [0, 0, 0, 1, 1, 1], [0], [0]>} : vector<4x16x8xbf16>, vector<4x16x8xbf16>, vector<4x16x16xf32> -> vector<4x16x16xf32>
    %c3 = arith.constant 3 : index
    %c0_38 = arith.constant 0 : index
    %c0_39 = arith.constant 0 : index
    %126 = vector.load %arg8[%c3, %c0_38, %c0_39] : memref<4x16x16xf32, #tpu.memory_space<vmem>>, vector<1x16x16xf32>
    %127 = vector.shape_cast %126 : vector<1x16x16xf32> to vector<16x16xf32>
    %128 = vector.shape_cast %127 : vector<16x16xf32> to vector<1x16x16xf32>
    %129 = vector.broadcast %128 : vector<1x16x16xf32> to vector<4x16x16xf32>
    %130 = arith.addf %125, %129 : vector<4x16x16xf32>
    %131 = vector.shape_cast %130 : vector<4x16x16xf32> to vector<1x4x16x16xf32>
    %132 = vector.shape_cast %34 : vector<4x16x16xf32> to vector<1x4x16x16xf32>
    %133 = arith.addf %131, %132 : vector<1x4x16x16xf32>
    %134 = vector.shape_cast %133 : vector<1x4x16x16xf32> to vector<4x16x16xf32>
    %cst_40 = arith.constant dense<0xFF800000> : vector<4x16xf32>
    %135 = vector.multi_reduction <maximumf>, %134, %cst_40 [2] : vector<4x16x16xf32> to vector<4x16xf32>
    %136 = vector.shape_cast %135 : vector<4x16xf32> to vector<4x16x1xf32>
    %137 = vector.broadcast %136 : vector<4x16x1xf32> to vector<4x16x16xf32>
    %138 = arith.subf %134, %137 : vector<4x16x16xf32>
    %139 = math.exp %138 : vector<4x16x16xf32>
    %cst_41 = arith.constant dense<0.000000e+00> : vector<4x16xf32>
    %140 = vector.multi_reduction <add>, %139, %cst_41 [2] : vector<4x16x16xf32> to vector<4x16xf32>
    %141 = vector.shape_cast %140 : vector<4x16xf32> to vector<4x16x1xf32>
    %142 = tpu.reciprocal %141 {approx = true} : vector<4x16x1xf32> -> vector<4x16x1xf32>
    %143 = vector.broadcast %142 : vector<4x16x1xf32> to vector<4x16x16xf32>
    %144 = arith.mulf %139, %143 : vector<4x16x16xf32>
    %145 = arith.truncf %144 : vector<4x16x16xf32> to vector<4x16x16xbf16>
    %cst_42 = arith.constant dense<0.000000e+00> : vector<4x16x8xf32>
    %146 = tpu.matmul %145, %124, %cst_42 {dimension_numbers = #tpu.dot_dimension_numbers<[2], [1], [1], [2], [0, 0, 0, 1, 1, 2], [0], [0]>} : vector<4x16x16xbf16>, vector<4x16x8xbf16>, vector<4x16x8xf32> -> vector<4x16x8xf32>
    %147 = tpu.concatenate %62, %90, %118, %146 in 2 : vector<4x16x8xf32>, vector<4x16x8xf32>, vector<4x16x8xf32>, vector<4x16x8xf32> -> vector<4x16x32xf32>
    %148 = vector.shape_cast %147 : vector<4x16x32xf32> to vector<64x32xf32>
    %149 = arith.truncf %148 : vector<64x32xf32> to vector<64x32xbf16>
    %c0_43 = arith.constant 0 : index
    %c0_44 = arith.constant 0 : index
    %150 = vector.load %arg6[%c0_43, %c0_44] : memref<32x32xbf16, #tpu.memory_space<vmem>>, vector<32x32xbf16>
    %cst_45 = arith.constant dense<0.000000e+00> : vector<64x32xf32>
    %151 = tpu.matmul %149, %150, %cst_45 {dimension_numbers = #tpu.dot_dimension_numbers<[1], [0], [0], [1], [0, 0, 1, 1], [], []>} : vector<64x32xbf16>, vector<32x32xbf16>, vector<64x32xf32> -> vector<64x32xf32>
    %c0_46 = arith.constant 0 : index
    %c0_47 = arith.constant 0 : index
    %152 = vector.load %arg7[%c0_46, %c0_47] : memref<1x32xf32, #tpu.memory_space<vmem>>, vector<1x32xf32>
    %153 = vector.broadcast %152 : vector<1x32xf32> to vector<64x32xf32>
    %154 = arith.addf %151, %153 : vector<64x32xf32>
    %155 = vector.shape_cast %154 : vector<64x32xf32> to vector<4x16x32xf32>
    %156 = arith.truncf %155 : vector<4x16x32xf32> to vector<4x16x32xbf16>
    %c0_48 = arith.constant 0 : index
    %c0_49 = arith.constant 0 : index
    %c0_50 = arith.constant 0 : index
    %157 = vector.load %arg10[%c0_48, %c0_49, %c0_50] : memref<4x16x32xbf16, #tpu.memory_space<vmem>>, vector<4x16x32xbf16>
    tpu.vector_store %arg10[%c0_48, %c0_49, %c0_50], %156 {strides = array<i32>} : memref<4x16x32xbf16, #tpu.memory_space<vmem>>, vector<4x16x32xbf16>,
    return
  }
  func.func @transform_0(%arg0: i32) -> (i32, i32, i32) {
    %c0_i32 = arith.constant 0 : i32
    %c0_i32_0 = arith.constant 0 : i32
    %c0_i32_1 = arith.constant 0 : i32
    return %arg0, %c0_i32, %c0_i32_0 : i32, i32, i32
  }
  func.func @transform_1(%arg0: i32) -> (i32, i32) {
    %c0_i32 = arith.constant 0 : i32
    %c0_i32_0 = arith.constant 0 : i32
    %c0_i32_1 = arith.constant 0 : i32
    return %c0_i32, %c0_i32_0 : i32, i32
  }
  func.func @transform_2(%arg0: i32) -> (i32, i32) {
    %c0_i32 = arith.constant 0 : i32
    %c0_i32_0 = arith.constant 0 : i32
    %c0_i32_1 = arith.constant 0 : i32
    return %c0_i32, %c0_i32_0 : i32, i32
  }
  func.func @transform_3(%arg0: i32) -> (i32, i32) {
    %c0_i32 = arith.constant 0 : i32
    %c0_i32_0 = arith.constant 0 : i32
    %c0_i32_1 = arith.constant 0 : i32
    return %c0_i32, %c0_i32_0 : i32, i32
  }
  func.func @transform_4(%arg0: i32) -> (i32, i32) {
    %c0_i32 = arith.constant 0 : i32
    %c0_i32_0 = arith.constant 0 : i32
    %c0_i32_1 = arith.constant 0 : i32
    return %c0_i32, %c0_i32_0 : i32, i32
  }
  func.func @transform_5(%arg0: i32) -> (i32, i32) {
    %c0_i32 = arith.constant 0 : i32
    %c0_i32_0 = arith.constant 0 : i32
    %c0_i32_1 = arith.constant 0 : i32
    return %c0_i32, %c0_i32_0 : i32, i32
  }
  func.func @transform_6(%arg0: i32) -> (i32, i32) {
    %c0_i32 = arith.constant 0 : i32
    %c0_i32_0 = arith.constant 0 : i32
    %c0_i32_1 = arith.constant 0 : i32
    return %c0_i32, %c0_i32_0 : i32, i32
  }
  func.func @transform_7(%arg0: i32) -> (i32, i32, i32) {
    %c0_i32 = arith.constant 0 : i32
    %c0_i32_0 = arith.constant 0 : i32
    %c0_i32_1 = arith.constant 0 : i32
    %c0_i32_2 = arith.constant 0 : i32
    return %c0_i32, %c0_i32_0, %c0_i32_1 : i32, i32, i32
  }
  func.func @transform_8(%arg0: i32) -> (i32, i32, i32) {
    %c0_i32 = arith.constant 0 : i32
    %c0_i32_0 = arith.constant 0 : i32
    %c0_i32_1 = arith.constant 0 : i32
    %c0_i32_2 = arith.constant 0 : i32
    return %c0_i32, %c0_i32_0, %c0_i32_1 : i32, i32, i32
  }
  func.func @transform_9(%arg0: i32) -> (i32, i32, i32) {
    %c0_i32 = arith.constant 0 : i32
    %c0_i32_0 = arith.constant 0 : i32
    %c0_i32_1 = arith.constant 0 : i32
    return %arg0, %c0_i32, %c0_i32_0 : i32, i32, i32
  }
}

</mosaic_0001>

<llo_original>
// kernel: tpu_custom_call.1
$region0: #{tpu_custom_call.1}
  #allocation0 [shape = 'u32[]', space=smem, size = 0x4, offset = 0x4, fixed_abs, tag = 'smem constant byte address 0x4 - core index']
  #allocation1 [shape = 'u32[72,128]{1,0:T(1,128)}', space=vmem, size = 0x9000, scoped, tag = 'internal scratch']
  %s0 = inlined_call_operand.hbm [shape: bf16[8,16,32], index: 0, kind: input, shape index: {}]
  %s1 = inlined_call_operand.hbm [shape: f32[1,32], index: 1, kind: input, shape index: {}]
  %s2 = inlined_call_operand.vmem [shape: f32[1,32], index: 2, kind: input, shape index: {}]
  %s3 = inlined_call_operand.hbm [shape: bf16[32,96], index: 3, kind: input, shape index: {}]
  %s4 = inlined_call_operand.vmem [shape: f32[1,96], index: 4, kind: input, shape index: {}]
  %s5 = inlined_call_operand.hbm [shape: bf16[32,32], index: 5, kind: input, shape index: {}]
  %s6 = inlined_call_operand.vmem [shape: f32[1,32], index: 6, kind: input, shape index: {}]
  %s7 = inlined_call_operand.hbm [shape: f32[4,16,16], index: 7, kind: input, shape index: {}]
  %s8 = inlined_call_operand.hbm [shape: f32[4,16,16], index: 8, kind: input, shape index: {}]
  %s9 = inlined_call_operand.hbm [shape: bf16[8,16,32], index: 9, kind: output, shape index: {}]
  %s10 = sld [smem:[#allocation0]]
  $region93: #{tpu_custom_call.1} parent=0
    _
  %s12 = ssub.s32 1, %s10
  %s13 = scalar_select 0, %s12, %s10
  $region1: #{tpu_custom_call.1} parent=0
    #allocation2 [shape = 'u8[32768]{0}', space=vmem, size = 0x8000, scoped, tag = 'input window, operand 0']
    #allocation3 [shape = 's32[2]{0}', space=sflag, size = 0x8, scoped, tag = 'scoped memory for tpu_custom_call.1']
    #allocation4 [shape = 's32[2]{0}', space=sflag, size = 0x8, scoped, tag = 'scoped memory for tpu_custom_call.1']
    #allocation5 [shape = 'u8[512]{0}', space=vmem, size = 0x400, scoped, tag = 'input window, operand 1, single buffered']
    #allocation6 [shape = 's32[1]{0}', space=sflag, size = 0x4, scoped, tag = 'scoped memory for tpu_custom_call.1']
    #allocation7 [shape = 'u8[8192]{0}', space=vmem, size = 0x2000, scoped, tag = 'input window, operand 3, single buffered']
    #allocation8 [shape = 'u8[8192]{0}', space=vmem, size = 0x2000, scoped, tag = 'input window, operand 5, single buffered']
    #allocation9 [shape = 's32[1]{0}', space=sflag, size = 0x4, scoped, tag = 'scoped memory for tpu_custom_call.1']
    #allocation10 [shape = 'u8[32768]{0}', space=vmem, size = 0x8000, scoped, tag = 'input window, operand 7, single buffered']
    #allocation11 [shape = 'u8[32768]{0}', space=vmem, size = 0x8000, scoped, tag = 'input window, operand 8, single buffered']
    #allocation12 [shape = 's32[1]{0}', space=sflag, size = 0x4, scoped, tag = 'scoped memory for tpu_custom_call.1']
    #allocation13 [shape = 'u8[32768]{0}', space=vmem, size = 0x8000, scoped, tag = 'output window, operand 0']
    %14 = vsyncpa [#allocation3], 0
    %s15 = scalar_lea.sflag [#allocation3], 1
    %16 = vsyncpa %s15, 0
    %17 = vsyncpa [#allocation6], 0
    %18 = vsyncpa [#allocation9], 0
    %19 = vsyncpa [#allocation12], 0
    %20 = vsyncpa [#allocation4], 0
    %s21 = scalar_lea.sflag [#allocation4], 1
    %22 = vsyncpa %s21, 0
    loop: start=0, step=1, limit=4
    $region2: #{tpu_custom_call.1} parent=1 // loop_pre_header
      _
    $region3: #{tpu_custom_call.1} parent=1 // loop_header
      %s24 = sphi 0, %s28
      %p25 = scmp.ge.s32.totalorder %s24, 4
      %s34 = sphi 0, %s36
      %s37 = sphi 0, %s34
      %s38 = sphi 0, %s37
      %s54 = sphi 0, %s38
      %s58 = sphi 0, %s58
      %s60 = sphi 0, %s58
      %s61 = sphi 0, %s60
      %s75 = sphi 0, %s61
      %s79 = sphi 0, %s79
      %s81 = sphi 0, %s79
      %s82 = sphi 0, %s81
      %s96 = sphi 0, %s82
      %s100 = sphi 0, %s100
      %s102 = sphi 0, %s100
      %s103 = sphi 0, %s102
      %s117 = sphi 0, %s103
      %s121 = sphi 0, %s121
      %s123 = sphi 0, %s121
      %s124 = sphi 0, %s123
      %s138 = sphi 0, %s124
      %s142 = sphi 0, %s142
      %s144 = sphi 0, %s142
      %s145 = sphi 0, %s144
      %s159 = sphi 0, %s145
      %s163 = sphi 0, %s163
      %s165 = sphi 0, %s163
      %s166 = sphi 0, %s165
      %s180 = sphi 0, %s166
      %s184 = sphi 0, %s184
      %s186 = sphi 0, %s184
      %s187 = sphi 0, %s186
      %s201 = sphi 0, %s187
      %s205 = sphi 0, %s205
      %s207 = sphi 0, %s205
      %s208 = sphi 0, %s207
      %s222 = sphi 0, %s208
      %s228 = sphi 0, %s230
      %s231 = sphi 0, %s228
      %s232 = sphi 0, %s231
      %s248 = sphi 0, %s232
    $region4: #{tpu_custom_call.1} parent=1 // loop_header_branch
      %27 = sbr.rel (%p25) target = $region8
    $region5: #{tpu_custom_call.1} parent=1 // loop_body
      %s29 = ssub.s32 %s24, 1
      %s30 = ssub.s32 %s24, 2
      %s31 = sadd.s32 %s24, 1
      %s32 = ssub.s32 %s24, %s31
      %p33 = scmp.eq.s32.totalorder %s32, 0
      %s35 = sadd.s32 %s34, 1
      %s36 = scalar_select %p33, %s34, %s35
      %p39 = pneg %p33
      %p40 = scmp.eq.s32.totalorder %s24, 1
      %p41 = por %p39, %p40
      %p42 = scmp.ne.s32.totalorder %s34, %s37
      %p43 = scmp.eq.s32.totalorder %s24, 0
      %p44 = por %p42, %p43
      %p45 = scmp.ne.s32.totalorder %s34, %s37
      %p46 = scmp.eq.s32.totalorder %s29, 1
      %p47 = por %p45, %p46
      %p48 = scmp.ne.s32.totalorder %s37, %s38
      %p49 = scmp.eq.s32.totalorder %s29, 0
      %p50 = por %p48, %p49
      %p51 = scmp.ne.s32.totalorder %s37, %s38
      %p52 = scmp.eq.s32.totalorder %s30, 1
      %p53 = por %p51, %p52
      %p55 = scmp.ne.s32.totalorder %s38, %s54
      %p56 = scmp.eq.s32.totalorder %s30, 0
      %p57 = por %p55, %p56
      %s59 = sadd.s32 %s58, 1
      %p62 = scmp.eq.s32.totalorder %s24, 1
      %p63 = scmp.ne.s32.totalorder %s58, %s60
      %p64 = scmp.eq.s32.totalorder %s24, 0
      %p65 = por %p63, %p64
      %p66 = scmp.ne.s32.totalorder %s58, %s60
      %p67 = scmp.eq.s32.totalorder %s29, 1
      %p68 = por %p66, %p67
      %p69 = scmp.ne.s32.totalorder %s60, %s61
      %p70 = scmp.eq.s32.totalorder %s29, 0
      %p71 = por %p69, %p70
      %p72 = scmp.ne.s32.totalorder %s60, %s61
      %p73 = scmp.eq.s32.totalorder %s30, 1
      %p74 = por %p72, %p73
      %p76 = scmp.ne.s32.totalorder %s61, %s75
      %p77 = scmp.eq.s32.totalorder %s30, 0
      %p78 = por %p76, %p77
      %s80 = sadd.s32 %s79, 1
      %p83 = scmp.eq.s32.totalorder %s24, 1
      %p84 = scmp.ne.s32.totalorder %s79, %s81
      %p85 = scmp.eq.s32.totalorder %s24, 0
      %p86 = por %p84, %p85
      %p87 = scmp.ne.s32.totalorder %s79, %s81
      %p88 = scmp.eq.s32.totalorder %s29, 1
      %p89 = por %p87, %p88
      %p90 = scmp.ne.s32.totalorder %s81, %s82
      %p91 = scmp.eq.s32.totalorder %s29, 0
      %p92 = por %p90, %p91
      %p93 = scmp.ne.s32.totalorder %s81, %s82
      %p94 = scmp.eq.s32.totalorder %s30, 1
      %p95 = por %p93, %p94
      %p97 = scmp.ne.s32.totalorder %s82, %s96
      %p98 = scmp.eq.s32.totalorder %s30, 0
      %p99 = por %p97, %p98
      %s101 = sadd.s32 %s100, 1
      %p104 = scmp.eq.s32.totalorder %s24, 1
      %p105 = scmp.ne.s32.totalorder %s100, %s102
      %p106 = scmp.eq.s32.totalorder %s24, 0
      %p107 = por %p105, %p106
      %p108 = scmp.ne.s32.totalorder %s100, %s102
      %p109 = scmp.eq.s32.totalorder %s29, 1
      %p110 = por %p108, %p109
      %p111 = scmp.ne.s32.totalorder %s102, %s103
      %p112 = scmp.eq.s32.totalorder %s29, 0
      %p113 = por %p111, %p112
      %p114 = scmp.ne.s32.totalorder %s102, %s103
      %p115 = scmp.eq.s32.totalorder %s30, 1
      %p116 = por %p114, %p115
      %p118 = scmp.ne.s32.totalorder %s103, %s117
      %p119 = scmp.eq.s32.totalorder %s30, 0
      %p120 = por %p118, %p119
      %s122 = sadd.s32 %s121, 1
      %p125 = scmp.eq.s32.totalorder %s24, 1
      %p126 = scmp.ne.s32.totalorder %s121, %s123
      %p127 = scmp.eq.s32.totalorder %s24, 0
      %p128 = por %p126, %p127
      %p129 = scmp.ne.s32.totalorder %s121, %s123
      %p130 = scmp.eq.s32.totalorder %s29, 1
      %p131 = por %p129, %p130
      %p132 = scmp.ne.s32.totalorder %s123, %s124
      %p133 = scmp.eq.s32.totalorder %s29, 0
      %p134 = por %p132, %p133
      %p135 = scmp.ne.s32.totalorder %s123, %s124
      %p136 = scmp.eq.s32.totalorder %s30, 1
      %p137 = por %p135, %p136
      %p139 = scmp.ne.s32.totalorder %s124, %s138
      %p140 = scmp.eq.s32.totalorder %s30, 0
      %p141 = por %p139, %p140
      %s143 = sadd.s32 %s142, 1
      %p146 = scmp.eq.s32.totalorder %s24, 1
      %p147 = scmp.ne.s32.totalorder %s142, %s144
      %p148 = scmp.eq.s32.totalorder %s24, 0
      %p149 = por %p147, %p148
      %p150 = scmp.ne.s32.totalorder %s142, %s144
      %p151 = scmp.eq.s32.totalorder %s29, 1
      %p152 = por %p150, %p151
      %p153 = scmp.ne.s32.totalorder %s144, %s145
      %p154 = scmp.eq.s32.totalorder %s29, 0
      %p155 = por %p153, %p154
      %p156 = scmp.ne.s32.totalorder %s144, %s145
      %p157 = scmp.eq.s32.totalorder %s30, 1
      %p158 = por %p156, %p157
      %p160 = scmp.ne.s32.totalorder %s145, %s159
      %p161 = scmp.eq.s32.totalorder %s30, 0
      %p162 = por %p160, %p161
      %s164 = sadd.s32 %s163, 1
      %p167 = scmp.eq.s32.totalorder %s24, 1
      %p168 = scmp.ne.s32.totalorder %s163, %s165
      %p169 = scmp.eq.s32.totalorder %s24, 0
      %p170 = por %p168, %p169
      %p171 = scmp.ne.s32.totalorder %s163, %s165
      %p172 = scmp.eq.s32.totalorder %s29, 1
      %p173 = por %p171, %p172
      %p174 = scmp.ne.s32.totalorder %s165, %s166
      %p175 = scmp.eq.s32.totalorder %s29, 0
      %p176 = por %p174, %p175
      %p177 = scmp.ne.s32.totalorder %s165, %s166
      %p178 = scmp.eq.s32.totalorder %s30, 1
      %p179 = por %p177, %p178
      %p181 = scmp.ne.s32.totalorder %s166, %s180
      %p182 = scmp.eq.s32.totalorder %s30, 0
      %p183 = por %p181, %p182
      %s185 = sadd.s32 %s184, 1
      %p188 = scmp.eq.s32.totalorder %s24, 1
      %p189 = scmp.ne.s32.totalorder %s184, %s186
      %p190 = scmp.eq.s32.totalorder %s24, 0
      %p191 = por %p189, %p190
      %p192 = scmp.ne.s32.totalorder %s184, %s186
      %p193 = scmp.eq.s32.totalorder %s29, 1
      %p194 = por %p192, %p193
      %p195 = scmp.ne.s32.totalorder %s186, %s187
      %p196 = scmp.eq.s32.totalorder %s29, 0
      %p197 = por %p195, %p196
      %p198 = scmp.ne.s32.totalorder %s186, %s187
      %p199 = scmp.eq.s32.totalorder %s30, 1
      %p200 = por %p198, %p199
      %p202 = scmp.ne.s32.totalorder %s187, %s201
      %p203 = scmp.eq.s32.totalorder %s30, 0
      %p204 = por %p202, %p203
      %s206 = sadd.s32 %s205, 1
      %p209 = scmp.eq.s32.totalorder %s24, 1
      %p210 = scmp.ne.s32.totalorder %s205, %s207
      %p211 = scmp.eq.s32.totalorder %s24, 0
      %p212 = por %p210, %p211
      %p213 = scmp.ne.s32.totalorder %s205, %s207
      %p214 = scmp.eq.s32.totalorder %s29, 1
      %p215 = por %p213, %p214
      %p216 = scmp.ne.s32.totalorder %s207, %s208
      %p217 = scmp.eq.s32.totalorder %s29, 0
      %p218 = por %p216, %p217
      %p219 = scmp.ne.s32.totalorder %s207, %s208
      %p220 = scmp.eq.s32.totalorder %s30, 1
      %p221 = por %p219, %p220
      %p223 = scmp.ne.s32.totalorder %s208, %s222
      %p224 = scmp.eq.s32.totalorder %s30, 0
      %p225 = por %p223, %p224
      %s226 = ssub.s32 %s24, %s31
      %p227 = scmp.eq.s32.totalorder %s226, 0
      %s229 = sadd.s32 %s228, 1
      %s230 = scalar_select %p227, %s228, %s229
      %p233 = pneg %p227
      %p234 = scmp.eq.s32.totalorder %s24, 1
      %p235 = por %p233, %p234
      %p236 = scmp.ne.s32.totalorder %s228, %s231
      %p237 = scmp.eq.s32.totalorder %s24, 0
      %p238 = por %p236, %p237
      %p239 = scmp.ne.s32.totalorder %s228, %s231
      %p240 = scmp.eq.s32.totalorder %s29, 1
      %p241 = por %p239, %p240
      %p242 = scmp.ne.s32.totalorder %s231, %s232
      %p243 = scmp.eq.s32.totalorder %s29, 0
      %p244 = por %p242, %p243
      %p245 = scmp.ne.s32.totalorder %s231, %s232
      %p246 = scmp.eq.s32.totalorder %s30, 1
      %p247 = por %p245, %p246
      %p249 = scmp.ne.s32.totalorder %s232, %s248
      %p250 = scmp.eq.s32.totalorder %s30, 0
      %p251 = por %p249, %p250
      %p252 = scmp.le.s32.totalorder 1, %s24
      %p253 = scmp.lt.s32.totalorder %s24, 3
      %p254 = pnand %p252, %p253
      %p255 = pneg %p254
      // Predicated region
      $region9: #{tpu_custom_call.1} parent=5 // pred_check
        _
      $region10: #{tpu_custom_call.1} parent=5 // pred_check_branch
        %257 = sbr.rel (%p254) target = $region12
      $region11: #{tpu_custom_call.1} parent=5 // pred_region
        %s258 = ssub.s32 %s24, 1
        // Predicated region
        $region13: #{tpu_custom_call.1} parent=11 // pred_check
          %p259 = pneg %p71
        $region14: #{tpu_custom_call.1} parent=11 // pred_check_branch
          %261 = sbr.rel (%p259) target = $region16
        $region15: #{tpu_custom_call.1} parent=11 // pred_region
          %263 = vsyncadd [#allocation6], 0
          %s265 = sshll.u32 %s1, 4
          %s266 = int_to_ptr.hbm [resolvable:$true] %s265
          %s267 = sshll.u32 [#allocation5], 4
          %s268 = int_to_ptr.vmem [resolvable:$true] %s267
          %270 = dma.hbm_to_vmem [thread:$0]  %s266, 16, %s268, [#allocation6]
        $region16: #{tpu_custom_call.1} parent=11 // pred_fallthru
          _
        // Predicated region
        $region17: #{tpu_custom_call.1} parent=11 // pred_check
          %p271 = pneg %p92
        $region18: #{tpu_custom_call.1} parent=11 // pred_check_branch
          %273 = sbr.rel (%p271) target = $region20
        $region19: #{tpu_custom_call.1} parent=11 // pred_region
          _
        $region20: #{tpu_custom_call.1} parent=11 // pred_fallthru
          _
        // Predicated region
        $region21: #{tpu_custom_call.1} parent=11 // pred_check
          %p274 = pneg %p113
        $region22: #{tpu_custom_call.1} parent=11 // pred_check_branch
          %276 = sbr.rel (%p274) target = $region24
        $region23: #{tpu_custom_call.1} parent=11 // pred_region
          %278 = vsyncadd [#allocation6], 0
          %s279 = sshll.u32 %s3, 4
          %s280 = int_to_ptr.hbm [resolvable:$true] %s279
          %s281 = sshll.u32 [#allocation7], 4
          %s282 = int_to_ptr.vmem [resolvable:$true] %s281
          %287 = dma.hbm_to_vmem [thread:$0]  %s280, 256, %s282, [#allocation6], 64, 64, 4
        $region24: #{tpu_custom_call.1} parent=11 // pred_fallthru
          _
        // Predicated region
        $region25: #{tpu_custom_call.1} parent=11 // pred_check
          %p288 = pneg %p134
        $region26: #{tpu_custom_call.1} parent=11 // pred_check_branch
          %290 = sbr.rel (%p288) target = $region28
        $region27: #{tpu_custom_call.1} parent=11 // pred_region
          _
        $region28: #{tpu_custom_call.1} parent=11 // pred_fallthru
          _
        // Predicated region
        $region29: #{tpu_custom_call.1} parent=11 // pred_check
          %p291 = pneg %p155
        $region30: #{tpu_custom_call.1} parent=11 // pred_check_branch
          %293 = sbr.rel (%p291) target = $region32
        $region31: #{tpu_custom_call.1} parent=11 // pred_region
          %295 = vsyncadd [#allocation9], 0
          %s296 = sshll.u32 %s5, 4
          %s297 = int_to_ptr.hbm [resolvable:$true] %s296
          %s298 = sshll.u32 [#allocation8], 4
          %s299 = int_to_ptr.vmem [resolvable:$true] %s298
          %304 = dma.hbm_to_vmem [thread:$0]  %s297, 256, %s299, [#allocation9], 64, 64, 4
        $region32: #{tpu_custom_call.1} parent=11 // pred_fallthru
          _
        // Predicated region
        $region33: #{tpu_custom_call.1} parent=11 // pred_check
          %p305 = pneg %p176
        $region34: #{tpu_custom_call.1} parent=11 // pred_check_branch
          %307 = sbr.rel (%p305) target = $region36
        $region35: #{tpu_custom_call.1} parent=11 // pred_region
          _
        $region36: #{tpu_custom_call.1} parent=11 // pred_fallthru
          _
        // Predicated region
        $region37: #{tpu_custom_call.1} parent=11 // pred_check
          %p308 = pneg %p197
        $region38: #{tpu_custom_call.1} parent=11 // pred_check_branch
          %310 = sbr.rel (%p308) target = $region40
        $region39: #{tpu_custom_call.1} parent=11 // pred_region
          %312 = vsyncadd [#allocation9], 0
          %s313 = sshll.u32 %s7, 4
          %s314 = int_to_ptr.hbm [resolvable:$true] %s313
          %s315 = sshll.u32 [#allocation10], 4
          %s316 = int_to_ptr.vmem [resolvable:$true] %s315
          %321 = dma.hbm_to_vmem [thread:$0]  %s314, 1024, %s316, [#allocation9], 128, 128, 8
        $region40: #{tpu_custom_call.1} parent=11 // pred_fallthru
          _
        // Predicated region
        $region41: #{tpu_custom_call.1} parent=11 // pred_check
          %p322 = pneg %p218
        $region42: #{tpu_custom_call.1} parent=11 // pred_check_branch
          %324 = sbr.rel (%p322) target = $region44
        $region43: #{tpu_custom_call.1} parent=11 // pred_region
          %326 = vsyncadd [#allocation12], 0
          %s327 = sshll.u32 %s8, 4
          %s328 = int_to_ptr.hbm [resolvable:$true] %s327
          %s329 = sshll.u32 [#allocation11], 4
          %s330 = int_to_ptr.vmem [resolvable:$true] %s329
          %335 = dma.hbm_to_vmem [thread:$0]  %s328, 1024, %s330, [#allocation12], 128, 128, 8
        $region44: #{tpu_custom_call.1} parent=11 // pred_fallthru
          _
      $region12: #{tpu_custom_call.1} parent=5 // pred_fallthru
        _
      %p336 = scmp.lt.s32.totalorder %s24, 2
      // Predicated region
      $region45: #{tpu_custom_call.1} parent=5 // pred_check
        %p337 = pneg %p336
      $region46: #{tpu_custom_call.1} parent=5 // pred_check_branch
        %339 = sbr.rel (%p337) target = $region48
      $region47: #{tpu_custom_call.1} parent=5 // pred_region
        // Predicated region
        $region49: #{tpu_custom_call.1} parent=47 // pred_check
          %p340 = pneg %p44
        $region50: #{tpu_custom_call.1} parent=47 // pred_check_branch
          %342 = sbr.rel (%p340) target = $region52
        $region51: #{tpu_custom_call.1} parent=47 // pred_region
          %s343 = sand.u32 %s34, 1
          %s344 = scalar_lea.sflag [#allocation3], %s343
          %s345 = sand.u32 %s34, 1
          %s346 = smul.addr %s345, 32
          %s347 = scalar_lea.vmem [#allocation2], %s346
          %s348 = smul.u32 4, %s24
          %350 = vsyncadd %s344, 0
          %s351 = smul.addr %s348, 2
          %s352 = smul.addr %s351, 4
          %s353 = scalar_lea.hbm %s0, %s352
          %s354 = sshll.u32 %s353, 4
          %s355 = int_to_ptr.hbm [resolvable:$true] %s354
          %s356 = sshll.u32 %s347, 4
          %s357 = int_to_ptr.vmem [resolvable:$true] %s356
          %362 = dma.hbm_to_vmem [thread:$0]  %s355, 512, %s357, %s344, 64, 64, 4
        $region52: #{tpu_custom_call.1} parent=47 // pred_fallthru
          _
      $region48: #{tpu_custom_call.1} parent=5 // pred_fallthru
        _
      %p363 = scmp.le.s32.totalorder 1, %s24
      %p364 = scmp.lt.s32.totalorder %s24, 3
      %p365 = pnand %p363, %p364
      %p366 = pneg %p365
      // Predicated region
      $region53: #{tpu_custom_call.1} parent=5 // pred_check
        _
      $region54: #{tpu_custom_call.1} parent=5 // pred_check_branch
        %368 = sbr.rel (%p365) target = $region56
      $region55: #{tpu_custom_call.1} parent=5 // pred_region
        %s369 = ssub.s32 %s24, 1
        %s370 = sand.u32 %s37, 1
        %s371 = scalar_lea.sflag [#allocation3], %s370
        %s372 = sand.u32 %s37, 1
        %s373 = smul.addr %s372, 32
        %s374 = scalar_lea.vmem [#allocation2], %s373
        // Predicated region
        $region57: #{tpu_custom_call.1} parent=55 // pred_check
          %p375 = pneg %p50
        $region58: #{tpu_custom_call.1} parent=55 // pred_check_branch
          %377 = sbr.rel (%p375) target = $region60
        $region59: #{tpu_custom_call.1} parent=55 // pred_region
          %379 = dma.done %s371, 512
        $region60: #{tpu_custom_call.1} parent=55 // pred_fallthru
          _
        // Predicated region
        $region61: #{tpu_custom_call.1} parent=55 // pred_check
          %p380 = pneg %p71
        $region62: #{tpu_custom_call.1} parent=55 // pred_check_branch
          %382 = sbr.rel (%p380) target = $region64
        $region63: #{tpu_custom_call.1} parent=55 // pred_region
          %384 = dma.done [#allocation6], 16
        $region64: #{tpu_custom_call.1} parent=55 // pred_fallthru
          _
        // Predicated region
        $region65: #{tpu_custom_call.1} parent=55 // pred_check
          %p385 = pneg %p113
        $region66: #{tpu_custom_call.1} parent=55 // pred_check_branch
          %387 = sbr.rel (%p385) target = $region68
        $region67: #{tpu_custom_call.1} parent=55 // pred_region
          %389 = dma.done [#allocation6], 256
        $region68: #{tpu_custom_call.1} parent=55 // pred_fallthru
          _
        // Predicated region
        $region69: #{tpu_custom_call.1} parent=55 // pred_check
          %p390 = pneg %p155
        $region70: #{tpu_custom_call.1} parent=55 // pred_check_branch
          %392 = sbr.rel (%p390) target = $region72
        $region71: #{tpu_custom_call.1} parent=55 // pred_region
          %394 = dma.done [#allocation9], 256
        $region72: #{tpu_custom_call.1} parent=55 // pred_fallthru
          _
        // Predicated region
        $region73: #{tpu_custom_call.1} parent=55 // pred_check
          %p395 = pneg %p197
        $region74: #{tpu_custom_call.1} parent=55 // pred_check_branch
          %397 = sbr.rel (%p395) target = $region76
        $region75: #{tpu_custom_call.1} parent=55 // pred_region
          %399 = dma.done [#allocation9], 1024
        $region76: #{tpu_custom_call.1} parent=55 // pred_fallthru
          _
        // Predicated region
        $region77: #{tpu_custom_call.1} parent=55 // pred_check
          %p400 = pneg %p218
        $region78: #{tpu_custom_call.1} parent=55 // pred_check_branch
          %402 = sbr.rel (%p400) target = $region80
        $region79: #{tpu_custom_call.1} parent=55 // pred_region
          %404 = dma.done [#allocation12], 1024
        $region80: #{tpu_custom_call.1} parent=55 // pred_fallthru
          _
        %s405 = sand.u32 %s37, 1
        %s406 = scalar_lea.sflag [#allocation3], %s405
        %s407 = sand.u32 %s37, 1
        %s408 = smul.addr %s407, 32
        %s409 = scalar_lea.vmem [#allocation2], %s408
        %p410 = pneg %p50
        %p411 = pneg %p47
        %p412 = pneg %p71
        %p413 = pneg %p68
        %p414 = pneg %p92
        %p415 = pneg %p89
        %p416 = pneg %p113
        %p417 = pneg %p110
        %p418 = pneg %p134
        %p419 = pneg %p131
        %p420 = pneg %p155
        %p421 = pneg %p152
        %p422 = pneg %p176
        %p423 = pneg %p173
        %p424 = pneg %p197
        %p425 = pneg %p194
        %p426 = pneg %p218
        %p427 = pneg %p215
        %p428 = pneg %p244
        %p429 = pneg %p241
        %s430 = sand.u32 %s231, 1
        %s431 = scalar_lea.sflag [#allocation4], %s430
        %s432 = sand.u32 %s231, 1
        %s433 = smul.addr %s432, 32
        %s434 = scalar_lea.vmem [#allocation13], %s433
        %s435 = smul.u32 4, %s29
        %s436 = smul.u32 4, %s29
        %v438 = vld [vmem:[%s374] sm:$0xf]
        %v439 = vld [vmem:[%s374 + $0x4] sm:$0xf]
        %v440 = vld [vmem:[%s374 + $0x8] sm:$0xf]
        %v441 = vld [vmem:[%s374 + $0xc] sm:$0xf]
        %v442 = vld [vmem:[%s374 + $0x10] sm:$0xf]
        %v443 = vld [vmem:[%s374 + $0x14] sm:$0xf]
        %v444 = vld [vmem:[%s374 + $0x18] sm:$0xf]
        %v445 = vld [vmem:[%s374 + $0x1c] sm:$0xf]
        %v446 = vunpack.c.l.bf16 %v438
        %v447 = vunpack.c.l.bf16 %v439
        %v448 = vunpack.c.l.bf16 %v440
        %v449 = vunpack.c.l.bf16 %v441
        %v450 = vunpack.c.l.bf16 %v442
        %v451 = vunpack.c.l.bf16 %v443
        %v452 = vunpack.c.l.bf16 %v444
        %v453 = vunpack.c.l.bf16 %v445
        %vm454 = vcmask 261120
        %v455 = vsel %vm454, %v446, 0.0
        %456 = vadd.xlane.f32.xlu0 %v455
        %v457 = vpop.xlane.xlu0 %456
        %v458 = vsel %vm454, %v447, 0.0
        %459 = vadd.xlane.f32.xlu0 %v458
        %v460 = vpop.xlane.xlu0 %459
        %v461 = vsel %vm454, %v448, 0.0
        %462 = vadd.xlane.f32.xlu0 %v461
        %v463 = vpop.xlane.xlu0 %462
        %v464 = vsel %vm454, %v449, 0.0
        %465 = vadd.xlane.f32.xlu0 %v464
        %v466 = vpop.xlane.xlu0 %465
        %v467 = vsel %vm454, %v450, 0.0
        %468 = vadd.xlane.f32.xlu0 %v467
        %v469 = vpop.xlane.xlu0 %468
        %v470 = vsel %vm454, %v451, 0.0
        %471 = vadd.xlane.f32.xlu0 %v470
        %v472 = vpop.xlane.xlu0 %471
        %v473 = vsel %vm454, %v452, 0.0
        %474 = vadd.xlane.f32.xlu0 %v473
        %v475 = vpop.xlane.xlu0 %474
        %v476 = vsel %vm454, %v453, 0.0
        %477 = vadd.xlane.f32.xlu0 %v476
        %v478 = vpop.xlane.xlu0 %477
        %v479 = vrcp.pop 32.0
        %v480 = vmul.f32 32.0, %v479
        %v481 = vsub.f32 1.0, %v480
        %v482 = vmul.f32 %v479, %v481
        %v483 = vadd.f32 %v479, %v482
        %vm484 = vweird.f32 %v479
        %v485 = vsel %vm484, %v479, %v483
        %v486 = vmul.f32 %v457, %v485
        %v487 = vmul.f32 %v460, %v485
        %v488 = vmul.f32 %v463, %v485
        %v489 = vmul.f32 %v466, %v485
        %v490 = vmul.f32 %v469, %v485
        %v491 = vmul.f32 %v472, %v485
        %v492 = vmul.f32 %v475, %v485
        %v493 = vmul.f32 %v478, %v485
        %v494 = vsub.f32 %v446, %v486
        %v495 = vsub.f32 %v447, %v487
        %v496 = vsub.f32 %v448, %v488
        %v497 = vsub.f32 %v449, %v489
        %v498 = vsub.f32 %v450, %v490
        %v499 = vsub.f32 %v451, %v491
        %v500 = vsub.f32 %v452, %v492
        %v501 = vsub.f32 %v453, %v493
        %v502 = vmul.f32 %v494, %v494
        %v503 = vmul.f32 %v495, %v495
        %v504 = vmul.f32 %v496, %v496
        %v505 = vmul.f32 %v497, %v497
        %v506 = vmul.f32 %v498, %v498
        %v507 = vmul.f32 %v499, %v499
        %v508 = vmul.f32 %v500, %v500
        %v509 = vmul.f32 %v501, %v501
        %v510 = vsel %vm454, %v502, 0.0
        %511 = vadd.xlane.f32.xlu0 %v510
        %v512 = vpop.xlane.xlu0 %511
        %v513 = vsel %vm454, %v503, 0.0
        %514 = vadd.xlane.f32.xlu0 %v513
        %v515 = vpop.xlane.xlu0 %514
        %v516 = vsel %vm454, %v504, 0.0
        %517 = vadd.xlane.f32.xlu0 %v516
        %v518 = vpop.xlane.xlu0 %517
        %v519 = vsel %vm454, %v505, 0.0
        %520 = vadd.xlane.f32.xlu0 %v519
        %v521 = vpop.xlane.xlu0 %520
        %v522 = vsel %vm454, %v506, 0.0
        %523 = vadd.xlane.f32.xlu0 %v522
        %v524 = vpop.xlane.xlu0 %523
        %v525 = vsel %vm454, %v507, 0.0
        %526 = vadd.xlane.f32.xlu0 %v525
        %v527 = vpop.xlane.xlu0 %526
        %v528 = vsel %vm454, %v508, 0.0
        %529 = vadd.xlane.f32.xlu0 %v528
        %v530 = vpop.xlane.xlu0 %529
        %v531 = vsel %vm454, %v509, 0.0
        %532 = vadd.xlane.f32.xlu0 %v531
        %v533 = vpop.xlane.xlu0 %532
        %v534 = vmul.f32 %v512, %v485
        %v535 = vmul.f32 %v515, %v485
        %v536 = vmul.f32 %v518, %v485
        %v537 = vmul.f32 %v521, %v485
        %v538 = vmul.f32 %v524, %v485
        %v539 = vmul.f32 %v527, %v485
        %v540 = vmul.f32 %v530, %v485
        %v541 = vmul.f32 %v533, %v485
        %v542 = vadd.f32 %v534, 1e-05
        %v543 = vadd.f32 %v535, 1e-05
        %v544 = vadd.f32 %v536, 1e-05
        %v545 = vadd.f32 %v537, 1e-05
        %v546 = vadd.f32 %v538, 1e-05
        %v547 = vadd.f32 %v539, 1e-05
        %v548 = vadd.f32 %v540, 1e-05
        %v549 = vadd.f32 %v541, 1e-05
        %v550 = vrsqrt.pop %v542
        %v551 = vmul.f32 %v550, %v542
        %v552 = vmul.f32 %v551, %v550
        %v553 = vmul.f32 0.5, %v552
        %v554 = vsub.f32 1.5, %v553
        %v555 = vmul.f32 %v550, %v554
        %vm556 = vweird.f32 %v542
        %vm557 = vweird.f32 %v550
        %vm558 = vmor %vm556, %vm557
        %v559 = vsel %vm558, %v550, %v555
        %v560 = vrsqrt.pop %v543
        %v561 = vmul.f32 %v560, %v543
        %v562 = vmul.f32 %v561, %v560
        %v563 = vmul.f32 0.5, %v562
        %v564 = vsub.f32 1.5, %v563
        %v565 = vmul.f32 %v560, %v564
        %vm566 = vweird.f32 %v543
        %vm567 = vweird.f32 %v560
        %vm568 = vmor %vm566, %vm567
        %v569 = vsel %vm568, %v560, %v565
        %v570 = vrsqrt.pop %v544
        %v571 = vmul.f32 %v570, %v544
        %v572 = vmul.f32 %v571, %v570
        %v573 = vmul.f32 0.5, %v572
        %v574 = vsub.f32 1.5, %v573
        %v575 = vmul.f32 %v570, %v574
        %vm576 = vweird.f32 %v544
        %vm577 = vweird.f32 %v570
        %vm578 = vmor %vm576, %vm577
        %v579 = vsel %vm578, %v570, %v575
        %v580 = vrsqrt.pop %v545
        %v581 = vmul.f32 %v580, %v545
        %v582 = vmul.f32 %v581, %v580
        %v583 = vmul.f32 0.5, %v582
        %v584 = vsub.f32 1.5, %v583
        %v585 = vmul.f32 %v580, %v584
        %vm586 = vweird.f32 %v545
        %vm587 = vweird.f32 %v580
        %vm588 = vmor %vm586, %vm587
        %v589 = vsel %vm588, %v580, %v585
        %v590 = vrsqrt.pop %v546
        %v591 = vmul.f32 %v590, %v546
        %v592 = vmul.f32 %v591, %v590
        %v593 = vmul.f32 0.5, %v592
        %v594 = vsub.f32 1.5, %v593
        %v595 = vmul.f32 %v590, %v594
        %vm596 = vweird.f32 %v546
        %vm597 = vweird.f32 %v590
        %vm598 = vmor %vm596, %vm597
        %v599 = vsel %vm598, %v590, %v595
        %v600 = vrsqrt.pop %v547
        %v601 = vmul.f32 %v600, %v547
        %v602 = vmul.f32 %v601, %v600
        %v603 = vmul.f32 0.5, %v602
        %v604 = vsub.f32 1.5, %v603
        %v605 = vmul.f32 %v600, %v604
        %vm606 = vweird.f32 %v547
        %vm607 = vweird.f32 %v600
        %vm608 = vmor %vm606, %vm607
        %v609 = vsel %vm608, %v600, %v605
        %v610 = vrsqrt.pop %v548
        %v611 = vmul.f32 %v610, %v548
        %v612 = vmul.f32 %v611, %v610
        %v613 = vmul.f32 0.5, %v612
        %v614 = vsub.f32 1.5, %v613
        %v615 = vmul.f32 %v610, %v614
        %vm616 = vweird.f32 %v548
        %vm617 = vweird.f32 %v610
        %vm618 = vmor %vm616, %vm617
        %v619 = vsel %vm618, %v610, %v615
        %v620 = vrsqrt.pop %v549
        %v621 = vmul.f32 %v620, %v549
        %v622 = vmul.f32 %v621, %v620
        %v623 = vmul.f32 0.5, %v622
        %v624 = vsub.f32 1.5, %v623
        %v625 = vmul.f32 %v620, %v624
        %vm626 = vweird.f32 %v549
        %vm627 = vweird.f32 %v620
        %vm628 = vmor %vm626, %vm627
        %v629 = vsel %vm628, %v620, %v625
        %v630 = vmul.f32 %v494, %v559
        %v631 = vmul.f32 %v495, %v569
        %v632 = vmul.f32 %v496, %v579
        %v633 = vmul.f32 %v497, %v589
        %v634 = vmul.f32 %v498, %v599
        %v635 = vmul.f32 %v499, %v609
        %v636 = vmul.f32 %v500, %v619
        %v637 = vmul.f32 %v501, %v629
        %v638 = vld [vmem:[#allocation5] sm:$0x1]
        %v640 = vperm.slane %v638, 0
        %v642 = vmul.f32 %v630, %v640
        %v643 = vmul.f32 %v631, %v640
        %v644 = vmul.f32 %v632, %v640
        %v645 = vmul.f32 %v633, %v640
        %v646 = vmul.f32 %v634, %v640
        %v647 = vmul.f32 %v635, %v640
        %v648 = vmul.f32 %v636, %v640
        %v649 = vmul.f32 %v637, %v640
        %v650 = vld [vmem:[%s2] sm:$0x1]
        %v652 = vperm.slane %v650, 0
        %v654 = vadd.f32 %v642, %v652
        %v655 = vadd.f32 %v643, %v652
        %v656 = vadd.f32 %v644, %v652
        %v657 = vadd.f32 %v645, %v652
        %v658 = vadd.f32 %v646, %v652
        %v659 = vadd.f32 %v647, %v652
        %v660 = vadd.f32 %v648, %v652
        %v661 = vadd.f32 %v649, %v652
        %v662 = vpack.c.bf16 %v655, %v654
        %v663 = vpack.c.bf16 %v657, %v656
        %v664 = vpack.c.bf16 %v659, %v658
        %v665 = vpack.c.bf16 %v661, %v660
        %v666 = vld [vmem:[#allocation7] sm:$0xf]
        %v667 = vld [vmem:[#allocation7 + $0x4] sm:$0xf]
        %v668 = vld [vmem:[#allocation7 + $0x8] sm:$0xf]
        %v669 = vld [vmem:[#allocation7 + $0xc] sm:$0xf]
        %v670 = vld [vmem:[%s4] sm:$0x1]
        %v672 = vperm.slane %v670, 0
        %v678 = vunpack.c.l.b16 %v666
        %v679 = vunpack.c.l.b16 %v667
        %v680 = vunpack.c.l.b16 %v668
        %v681 = vunpack.c.l.b16 %v669
        %v682 = vpack.c.b16 %v679, %v678
        %v683 = vpack.c.b16 %v681, %v680
        %v687 = vsel %vm454, %v662, 0
        %v690 = vsel %vm454, %v663, 0
        %v693 = vsel %vm454, %v664, 0
        %v696 = vsel %vm454, %v665, 0
        %698 = vmatpush.bf16.msra.mxu0 0
        %699 = vmatpush.bf16.msra.mxu0 0
        %700 = vmatpush.bf16.msra.mxu0 0
        %701 = vmatpush.bf16.msra.mxu0 0
        %702 = vmatpush.bf16.msra.mxu0 0
        %703 = vmatpush.bf16.msra.mxu0 0
        %704 = vmatpush.bf16.msra.mxu0 %v683
        %705 = vmatpush.bf16.msra.mxu0 %v682
        %706 = vmatmul.bf16.gmra.mxu0 %v687
        %v707 = vpop.f32.mrf.mxu0
        %v708 = vadd.f32 %v672, %v707
        %v709 = vpop.f32.mrf.mxu0
        %v710 = vadd.f32 %v672, %v709
        %711 = vmatmul.bf16.gmra.mxu0 %v690
        %v712 = vpop.f32.mrf.mxu0
        %v713 = vadd.f32 %v672, %v712
        %v714 = vpop.f32.mrf.mxu0
        %v715 = vadd.f32 %v672, %v714
        %716 = vmatmul.bf16.gmra.mxu0 %v693
        %v717 = vpop.f32.mrf.mxu0
        %v718 = vadd.f32 %v672, %v717
        %v719 = vpop.f32.mrf.mxu0
        %v720 = vadd.f32 %v672, %v719
        %721 = vmatmul.bf16.gmra.mxu0 %v696
        %v722 = vpop.f32.mrf.mxu0
        %v723 = vadd.f32 %v672, %v722
        %v724 = vpop.f32.mrf.mxu0
        %v725 = vadd.f32 %v672, %v724
        %726 = vdwg.mxu0
        %v727 = vld [vmem:[#allocation11] sm:$0xff]
        %v728 = vld [vmem:[#allocation11 + $0x8] sm:$0xff]
        %v729 = vld [vmem:[#allocation11 + $0x10] sm:$0xff]
        %v730 = vld [vmem:[#allocation11 + $0x18] sm:$0xff]
        %v731 = vld [vmem:[#allocation11 + $0x20] sm:$0xff]
        %v732 = vld [vmem:[#allocation11 + $0x28] sm:$0xff]
        %v733 = vld [vmem:[#allocation11 + $0x30] sm:$0xff]
        %v734 = vld [vmem:[#allocation11 + $0x38] sm:$0xff]
        %v735 = vpack.c.bf16 %v708, %v708
        %v736 = vpack.c.bf16 %v710, %v710
        %v737 = vpack.c.bf16 %v713, %v713
        %v738 = vpack.c.bf16 %v715, %v715
        %v739 = vpack.c.bf16 %v718, %v718
        %v740 = vpack.c.bf16 %v720, %v720
        %v741 = vpack.c.bf16 %v723, %v723
        %v742 = vpack.c.bf16 %v725, %v725
        %v743 = vld [vmem:[#allocation10] sm:$0xff]
        %v744 = vld [vmem:[#allocation10 + $0x8] sm:$0xff]
        %v747 = vunpack.c.l.b16 %v735
        %v748 = vunpack.c.l.b16 %v736
        %v749 = vpack.c.b16 %v748, %v747
        %750 = vrot.lane.b32.xlu0 %v749, 96
        %v751 = vpop.permute.xlu0 %750
        %vm752 = vcmask 64512
        %v754 = vsel %vm752, %v749, 0
        %v757 = vsel %vm752, %v751, 0
        %759 = vmatpush.bf16.xpose.msra.mxu0 0
        %760 = vmatpush.bf16.xpose.msra.mxu0 0
        %761 = vmatpush.bf16.xpose.msra.mxu0 0
        %762 = vmatpush.bf16.xpose.msra.mxu0 0
        %763 = vmatpush.bf16.xpose.msra.mxu0 0
        %764 = vmatpush.bf16.xpose.msra.mxu0 0
        %765 = vmatpush.bf16.xpose.msra.mxu0 0
        %766 = vmatpush.bf16.xpose.msra.mxu0 %v757
        %767 = vmatmul.bf16.gmra.mxu0 %v754
        %v768 = vpop.f32.mrf.mxu0
        %v769 = vadd.f32 %v743, %v768
        %v770 = vpop.f32.mrf.mxu0
        %v771 = vadd.f32 %v744, %v770
        %772 = vdwg.mxu0
        %v775 = vunpack.c.l.b16 %v737
        %v776 = vunpack.c.l.b16 %v738
        %v777 = vpack.c.b16 %v776, %v775
        %778 = vrot.lane.b32.xlu0 %v777, 96
        %v779 = vpop.permute.xlu0 %778
        %v781 = vsel %vm752, %v777, 0
        %v784 = vsel %vm752, %v779, 0
        %786 = vmatpush.bf16.xpose.msra.mxu0 0
        %787 = vmatpush.bf16.xpose.msra.mxu0 0
        %788 = vmatpush.bf16.xpose.msra.mxu0 0
        %789 = vmatpush.bf16.xpose.msra.mxu0 0
        %790 = vmatpush.bf16.xpose.msra.mxu0 0
        %791 = vmatpush.bf16.xpose.msra.mxu0 0
        %792 = vmatpush.bf16.xpose.msra.mxu0 0
        %793 = vmatpush.bf16.xpose.msra.mxu0 %v784
        %794 = vmatmul.bf16.gmra.mxu0 %v781
        %v795 = vpop.f32.mrf.mxu0
        %v796 = vadd.f32 %v743, %v795
        %v797 = vpop.f32.mrf.mxu0
        %v798 = vadd.f32 %v744, %v797
        %799 = vdwg.mxu0
        %v802 = vunpack.c.l.b16 %v739
        %v803 = vunpack.c.l.b16 %v740
        %v804 = vpack.c.b16 %v803, %v802
        %805 = vrot.lane.b32.xlu0 %v804, 96
        %v806 = vpop.permute.xlu0 %805
        %v808 = vsel %vm752, %v804, 0
        %v811 = vsel %vm752, %v806, 0
        %813 = vmatpush.bf16.xpose.msra.mxu0 0
        %814 = vmatpush.bf16.xpose.msra.mxu0 0
        %815 = vmatpush.bf16.xpose.msra.mxu0 0
        %816 = vmatpush.bf16.xpose.msra.mxu0 0
        %817 = vmatpush.bf16.xpose.msra.mxu0 0
        %818 = vmatpush.bf16.xpose.msra.mxu0 0
        %819 = vmatpush.bf16.xpose.msra.mxu0 0
        %820 = vmatpush.bf16.xpose.msra.mxu0 %v811
        %821 = vmatmul.bf16.gmra.mxu0 %v808
        %v822 = vpop.f32.mrf.mxu0
        %v823 = vadd.f32 %v743, %v822
        %v824 = vpop.f32.mrf.mxu0
        %v825 = vadd.f32 %v744, %v824
        %826 = vdwg.mxu0
        %v829 = vunpack.c.l.b16 %v741
        %v830 = vunpack.c.l.b16 %v742
        %v831 = vpack.c.b16 %v830, %v829
        %832 = vrot.lane.b32.xlu0 %v831, 96
        %v833 = vpop.permute.xlu0 %832
        %v835 = vsel %vm752, %v831, 0
        %v838 = vsel %vm752, %v833, 0
        %840 = vmatpush.bf16.xpose.msra.mxu0 0
        %841 = vmatpush.bf16.xpose.msra.mxu0 0
        %842 = vmatpush.bf16.xpose.msra.mxu0 0
        %843 = vmatpush.bf16.xpose.msra.mxu0 0
        %844 = vmatpush.bf16.xpose.msra.mxu0 0
        %845 = vmatpush.bf16.xpose.msra.mxu0 0
        %846 = vmatpush.bf16.xpose.msra.mxu0 0
        %847 = vmatpush.bf16.xpose.msra.mxu0 %v838
        %848 = vmatmul.bf16.gmra.mxu0 %v835
        %v849 = vpop.f32.mrf.mxu0
        %v850 = vadd.f32 %v743, %v849
        %v851 = vpop.f32.mrf.mxu0
        %v852 = vadd.f32 %v744, %v851
        %853 = vdwg.mxu0
        %v854 = vadd.f32 %v769, %v727
        %v855 = vadd.f32 %v771, %v728
        %v856 = vadd.f32 %v796, %v729
        %v857 = vadd.f32 %v798, %v730
        %v858 = vadd.f32 %v823, %v731
        %v859 = vadd.f32 %v825, %v732
        %v860 = vadd.f32 %v850, %v733
        %v861 = vadd.f32 %v852, %v734
        %vm862 = vcmask 130048
        %v863 = vsel %vm862, %v854, -inf
        %864 = vmax.xlane.f32.xlu0 %v863
        %v865 = vpop.xlane.xlu0 %864
        %v866 = vsel %vm862, %v855, -inf
        %867 = vmax.xlane.f32.xlu0 %v866
        %v868 = vpop.xlane.xlu0 %867
        %v869 = vsel %vm862, %v856, -inf
        %870 = vmax.xlane.f32.xlu0 %v869
        %v871 = vpop.xlane.xlu0 %870
        %v872 = vsel %vm862, %v857, -inf
        %873 = vmax.xlane.f32.xlu0 %v872
        %v874 = vpop.xlane.xlu0 %873
        %v875 = vsel %vm862, %v858, -inf
        %876 = vmax.xlane.f32.xlu0 %v875
        %v877 = vpop.xlane.xlu0 %876
        %v878 = vsel %vm862, %v859, -inf
        %879 = vmax.xlane.f32.xlu0 %v878
        %v880 = vpop.xlane.xlu0 %879
        %v881 = vsel %vm862, %v860, -inf
        %882 = vmax.xlane.f32.xlu0 %v881
        %v883 = vpop.xlane.xlu0 %882
        %v884 = vsel %vm862, %v861, -inf
        %885 = vmax.xlane.f32.xlu0 %v884
        %v886 = vpop.xlane.xlu0 %885
        %v887 = vsub.f32 %v854, %v865
        %v888 = vsub.f32 %v855, %v868
        %v889 = vsub.f32 %v856, %v871
        %v890 = vsub.f32 %v857, %v874
        %v891 = vsub.f32 %v858, %v877
        %v892 = vsub.f32 %v859, %v880
        %v893 = vsub.f32 %v860, %v883
        %v894 = vsub.f32 %v861, %v886
        %v895 = vmul.f32 %v887, 1.442695
        %v896 = vpow.pop %v895
        %v897 = vmul.f32 %v888, 1.442695
        %v898 = vpow.pop %v897
        %v899 = vmul.f32 %v889, 1.442695
        %v900 = vpow.pop %v899
        %v901 = vmul.f32 %v890, 1.442695
        %v902 = vpow.pop %v901
        %v903 = vmul.f32 %v891, 1.442695
        %v904 = vpow.pop %v903
        %v905 = vmul.f32 %v892, 1.442695
        %v906 = vpow.pop %v905
        %v907 = vmul.f32 %v893, 1.442695
        %v908 = vpow.pop %v907
        %v909 = vmul.f32 %v894, 1.442695
        %v910 = vpow.pop %v909
        %v911 = vsel %vm862, %v896, 0.0
        %912 = vadd.xlane.f32.xlu0 %v911
        %v913 = vpop.xlane.xlu0 %912
        %v914 = vsel %vm862, %v898, 0.0
        %915 = vadd.xlane.f32.xlu0 %v914
        %v916 = vpop.xlane.xlu0 %915
        %v917 = vsel %vm862, %v900, 0.0
        %918 = vadd.xlane.f32.xlu0 %v917
        %v919 = vpop.xlane.xlu0 %918
        %v920 = vsel %vm862, %v902, 0.0
        %921 = vadd.xlane.f32.xlu0 %v920
        %v922 = vpop.xlane.xlu0 %921
        %v923 = vsel %vm862, %v904, 0.0
        %924 = vadd.xlane.f32.xlu0 %v923
        %v925 = vpop.xlane.xlu0 %924
        %v926 = vsel %vm862, %v906, 0.0
        %927 = vadd.xlane.f32.xlu0 %v926
        %v928 = vpop.xlane.xlu0 %927
        %v929 = vsel %vm862, %v908, 0.0
        %930 = vadd.xlane.f32.xlu0 %v929
        %v931 = vpop.xlane.xlu0 %930
        %v932 = vsel %vm862, %v910, 0.0
        %933 = vadd.xlane.f32.xlu0 %v932
        %v934 = vpop.xlane.xlu0 %933
        %v935 = vrcp.pop %v913
        %v936 = vrcp.pop %v916
        %v937 = vrcp.pop %v919
        %v938 = vrcp.pop %v922
        %v939 = vrcp.pop %v925
        %v940 = vrcp.pop %v928
        %v941 = vrcp.pop %v931
        %v942 = vrcp.pop %v934
        %v943 = vmul.f32 %v896, %v935
        %v944 = vmul.f32 %v898, %v936
        %v945 = vmul.f32 %v900, %v937
        %v946 = vmul.f32 %v902, %v938
        %v947 = vmul.f32 %v904, %v939
        %v948 = vmul.f32 %v906, %v940
        %v949 = vmul.f32 %v908, %v941
        %v950 = vmul.f32 %v910, %v942
        %v951 = vpack.c.bf16 %v943, %v943
        %v952 = vpack.c.bf16 %v944, %v944
        %v953 = vpack.c.bf16 %v945, %v945
        %v954 = vpack.c.bf16 %v946, %v946
        %v955 = vpack.c.bf16 %v947, %v947
        %v956 = vpack.c.bf16 %v948, %v948
        %v957 = vpack.c.bf16 %v949, %v949
        %v958 = vpack.c.bf16 %v950, %v950
        %v961 = vunpack.c.l.b16 %v951
        %v962 = vunpack.c.l.b16 %v952
        %v963 = vpack.c.b16 %v962, %v961
        %964 = vrot.lane.b32.xlu0 %v749, 64
        %v965 = vpop.permute.xlu0 %964
        %v968 = vsel %vm862, %v963, 0
        %970 = vmatpush.bf16.msra.mxu0 0
        %971 = vmatpush.bf16.msra.mxu0 0
        %972 = vmatpush.bf16.msra.mxu0 0
        %973 = vmatpush.bf16.msra.mxu0 0
        %974 = vmatpush.bf16.msra.mxu0 0
        %975 = vmatpush.bf16.msra.mxu0 0
        %976 = vmatpush.bf16.msra.mxu0 0
        %977 = vmatpush.bf16.msra.mxu0 %v965
        %978 = vmatmul.bf16.gmra.mxu0 %v968
        %v979 = vpop.f32.mrf.mxu0
        %v980 = vadd.f32 0.0, %v979
        %v981 = vpop.f32.mrf.mxu0
        %v982 = vadd.f32 0.0, %v981
        %983 = vdwg.mxu0
        %v986 = vunpack.c.l.b16 %v953
        %v987 = vunpack.c.l.b16 %v954
        %v988 = vpack.c.b16 %v987, %v986
        %989 = vrot.lane.b32.xlu0 %v777, 64
        %v990 = vpop.permute.xlu0 %989
        %v993 = vsel %vm862, %v988, 0
        %995 = vmatpush.bf16.msra.mxu0 0
        %996 = vmatpush.bf16.msra.mxu0 0
        %997 = vmatpush.bf16.msra.mxu0 0
        %998 = vmatpush.bf16.msra.mxu0 0
        %999 = vmatpush.bf16.msra.mxu0 0
        %1000 = vmatpush.bf16.msra.mxu0 0
        %1001 = vmatpush.bf16.msra.mxu0 0
        %1002 = vmatpush.bf16.msra.mxu0 %v990
        %1003 = vmatmul.bf16.gmra.mxu0 %v993
        %v1004 = vpop.f32.mrf.mxu0
        %v1005 = vadd.f32 0.0, %v1004
        %v1006 = vpop.f32.mrf.mxu0
        %v1007 = vadd.f32 0.0, %v1006
        %1008 = vdwg.mxu0
        %v1011 = vunpack.c.l.b16 %v955
        %v1012 = vunpack.c.l.b16 %v956
        %v1013 = vpack.c.b16 %v1012, %v1011
        %1014 = vrot.lane.b32.xlu0 %v804, 64
        %v1015 = vpop.permute.xlu0 %1014
        %v1018 = vsel %vm862, %v1013, 0
        %1020 = vmatpush.bf16.msra.mxu0 0
        %1021 = vmatpush.bf16.msra.mxu0 0
        %1022 = vmatpush.bf16.msra.mxu0 0
        %1023 = vmatpush.bf16.msra.mxu0 0
        %1024 = vmatpush.bf16.msra.mxu0 0
        %1025 = vmatpush.bf16.msra.mxu0 0
        %1026 = vmatpush.bf16.msra.mxu0 0
        %1027 = vmatpush.bf16.msra.mxu0 %v1015
        %1028 = vmatmul.bf16.gmra.mxu0 %v1018
        %v1029 = vpop.f32.mrf.mxu0
        %v1030 = vadd.f32 0.0, %v1029
        %v1031 = vpop.f32.mrf.mxu0
        %v1032 = vadd.f32 0.0, %v1031
        %1033 = vdwg.mxu0
        %v1036 = vunpack.c.l.b16 %v957
        %v1037 = vunpack.c.l.b16 %v958
        %v1038 = vpack.c.b16 %v1037, %v1036
        %1039 = vrot.lane.b32.xlu0 %v831, 64
        %v1040 = vpop.permute.xlu0 %1039
        %v1043 = vsel %vm862, %v1038, 0
        %1045 = vmatpush.bf16.msra.mxu0 0
        %1046 = vmatpush.bf16.msra.mxu0 0
        %1047 = vmatpush.bf16.msra.mxu0 0
        %1048 = vmatpush.bf16.msra.mxu0 0
        %1049 = vmatpush.bf16.msra.mxu0 0
        %1050 = vmatpush.bf16.msra.mxu0 0
        %1051 = vmatpush.bf16.msra.mxu0 0
        %1052 = vmatpush.bf16.msra.mxu0 %v1040
        %1053 = vmatmul.bf16.gmra.mxu0 %v1043
        %v1054 = vpop.f32.mrf.mxu0
        %v1055 = vadd.f32 0.0, %v1054
        %v1056 = vpop.f32.mrf.mxu0
        %v1057 = vadd.f32 0.0, %v1056
        %1058 = vdwg.mxu0
        %s1059 = scalar_lea.vmem [#allocation10], 16
        %v1060 = vld [vmem:[%s1059] sm:$0xff]
        %v1061 = vld [vmem:[%s1059 + $0x8] sm:$0xff]
        %1062 = vrot.lane.b32.xlu0 %v749, 120
        %v1063 = vpop.permute.xlu0 %1062
        %1064 = vrot.lane.b32.xlu0 %v749, 88
        %v1065 = vpop.permute.xlu0 %1064
        %v1067 = vsel %vm752, %v1063, 0
        %v1070 = vsel %vm752, %v1065, 0
        %1072 = vmatpush.bf16.xpose.msra.mxu0 0
        %1073 = vmatpush.bf16.xpose.msra.mxu0 0
        %1074 = vmatpush.bf16.xpose.msra.mxu0 0
        %1075 = vmatpush.bf16.xpose.msra.mxu0 0
        %1076 = vmatpush.bf16.xpose.msra.mxu0 0
        %1077 = vmatpush.bf16.xpose.msra.mxu0 0
        %1078 = vmatpush.bf16.xpose.msra.mxu0 0
        %1079 = vmatpush.bf16.xpose.msra.mxu0 %v1070
        %1080 = vmatmul.bf16.gmra.mxu0 %v1067
        %v1081 = vpop.f32.mrf.mxu0
        %v1082 = vadd.f32 %v1060, %v1081
        %v1083 = vpop.f32.mrf.mxu0
        %v1084 = vadd.f32 %v1061, %v1083
        %1085 = vdwg.mxu0
        %1086 = vrot.lane.b32.xlu0 %v777, 120
        %v1087 = vpop.permute.xlu0 %1086
        %1088 = vrot.lane.b32.xlu0 %v777, 88
        %v1089 = vpop.permute.xlu0 %1088
        %v1091 = vsel %vm752, %v1087, 0
        %v1094 = vsel %vm752, %v1089, 0
        %1096 = vmatpush.bf16.xpose.msra.mxu0 0
        %1097 = vmatpush.bf16.xpose.msra.mxu0 0
        %1098 = vmatpush.bf16.xpose.msra.mxu0 0
        %1099 = vmatpush.bf16.xpose.msra.mxu0 0
        %1100 = vmatpush.bf16.xpose.msra.mxu0 0
        %1101 = vmatpush.bf16.xpose.msra.mxu0 0
        %1102 = vmatpush.bf16.xpose.msra.mxu0 0
        %1103 = vmatpush.bf16.xpose.msra.mxu0 %v1094
        %1104 = vmatmul.bf16.gmra.mxu0 %v1091
        %v1105 = vpop.f32.mrf.mxu0
        %v1106 = vadd.f32 %v1060, %v1105
        %v1107 = vpop.f32.mrf.mxu0
        %v1108 = vadd.f32 %v1061, %v1107
        %1109 = vdwg.mxu0
        %1110 = vrot.lane.b32.xlu0 %v804, 120
        %v1111 = vpop.permute.xlu0 %1110
        %1112 = vrot.lane.b32.xlu0 %v804, 88
        %v1113 = vpop.permute.xlu0 %1112
        %v1115 = vsel %vm752, %v1111, 0
        %v1118 = vsel %vm752, %v1113, 0
        %1120 = vmatpush.bf16.xpose.msra.mxu0 0
        %1121 = vmatpush.bf16.xpose.msra.mxu0 0
        %1122 = vmatpush.bf16.xpose.msra.mxu0 0
        %1123 = vmatpush.bf16.xpose.msra.mxu0 0
        %1124 = vmatpush.bf16.xpose.msra.mxu0 0
        %1125 = vmatpush.bf16.xpose.msra.mxu0 0
        %1126 = vmatpush.bf16.xpose.msra.mxu0 0
        %1127 = vmatpush.bf16.xpose.msra.mxu0 %v1118
        %1128 = vmatmul.bf16.gmra.mxu0 %v1115
        %v1129 = vpop.f32.mrf.mxu0
        %v1130 = vadd.f32 %v1060, %v1129
        %v1131 = vpop.f32.mrf.mxu0
        %v1132 = vadd.f32 %v1061, %v1131
        %1133 = vdwg.mxu0
        %1134 = vrot.lane.b32.xlu0 %v831, 120
        %v1135 = vpop.permute.xlu0 %1134
        %1136 = vrot.lane.b32.xlu0 %v831, 88
        %v1137 = vpop.permute.xlu0 %1136
        %v1139 = vsel %vm752, %v1135, 0
        %v1142 = vsel %vm752, %v1137, 0
        %1144 = vmatpush.bf16.xpose.msra.mxu0 0
        %1145 = vmatpush.bf16.xpose.msra.mxu0 0
        %1146 = vmatpush.bf16.xpose.msra.mxu0 0
        %1147 = vmatpush.bf16.xpose.msra.mxu0 0
        %1148 = vmatpush.bf16.xpose.msra.mxu0 0
        %1149 = vmatpush.bf16.xpose.msra.mxu0 0
        %1150 = vmatpush.bf16.xpose.msra.mxu0 0
        %1151 = vmatpush.bf16.xpose.msra.mxu0 %v1142
        %1152 = vmatmul.bf16.gmra.mxu0 %v1139
        %v1153 = vpop.f32.mrf.mxu0
        %v1154 = vadd.f32 %v1060, %v1153
        %v1155 = vpop.f32.mrf.mxu0
        %v1156 = vadd.f32 %v1061, %v1155
        %1157 = vdwg.mxu0
        %v1158 = vadd.f32 %v1082, %v727
        %v1159 = vadd.f32 %v1084, %v728
        %v1160 = vadd.f32 %v1106, %v729
        %v1161 = vadd.f32 %v1108, %v730
        %v1162 = vadd.f32 %v1130, %v731
        %v1163 = vadd.f32 %v1132, %v732
        %v1164 = vadd.f32 %v1154, %v733
        %v1165 = vadd.f32 %v1156, %v734
        %v1166 = vsel %vm862, %v1158, -inf
        %1167 = vmax.xlane.f32.xlu0 %v1166
        %v1168 = vpop.xlane.xlu0 %1167
        %v1169 = vsel %vm862, %v1159, -inf
        %1170 = vmax.xlane.f32.xlu0 %v1169
        %v1171 = vpop.xlane.xlu0 %1170
        %v1172 = vsel %vm862, %v1160, -inf
        %1173 = vmax.xlane.f32.xlu0 %v1172
        %v1174 = vpop.xlane.xlu0 %1173
        %v1175 = vsel %vm862, %v1161, -inf
        %1176 = vmax.xlane.f32.xlu0 %v1175
        %v1177 = vpop.xlane.xlu0 %1176
        %v1178 = vsel %vm862, %v1162, -inf
        %1179 = vmax.xlane.f32.xlu0 %v1178
        %v1180 = vpop.xlane.xlu0 %1179
        %v1181 = vsel %vm862, %v1163, -inf
        %1182 = vmax.xlane.f32.xlu0 %v1181
        %v1183 = vpop.xlane.xlu0 %1182
        %v1184 = vsel %vm862, %v1164, -inf
        %1185 = vmax.xlane.f32.xlu0 %v1184
        %v1186 = vpop.xlane.xlu0 %1185
        %v1187 = vsel %vm862, %v1165, -inf
        %1188 = vmax.xlane.f32.xlu0 %v1187
        %v1189 = vpop.xlane.xlu0 %1188
        %v1190 = vsub.f32 %v1158, %v1168
        %v1191 = vsub.f32 %v1159, %v1171
        %v1192 = vsub.f32 %v1160, %v1174
        %v1193 = vsub.f32 %v1161, %v1177
        %v1194 = vsub.f32 %v1162, %v1180
        %v1195 = vsub.f32 %v1163, %v1183
        %v1196 = vsub.f32 %v1164, %v1186
        %v1197 = vsub.f32 %v1165, %v1189
        %v1198 = vmul.f32 %v1190, 1.442695
        %v1199 = vpow.pop %v1198
        %v1200 = vmul.f32 %v1191, 1.442695
        %v1201 = vpow.pop %v1200
        %v1202 = vmul.f32 %v1192, 1.442695
        %v1203 = vpow.pop %v1202
        %v1204 = vmul.f32 %v1193, 1.442695
        %v1205 = vpow.pop %v1204
        %v1206 = vmul.f32 %v1194, 1.442695
        %v1207 = vpow.pop %v1206
        %v1208 = vmul.f32 %v1195, 1.442695
        %v1209 = vpow.pop %v1208
        %v1210 = vmul.f32 %v1196, 1.442695
        %v1211 = vpow.pop %v1210
        %v1212 = vmul.f32 %v1197, 1.442695
        %v1213 = vpow.pop %v1212
        %v1214 = vsel %vm862, %v1199, 0.0
        %1215 = vadd.xlane.f32.xlu0 %v1214
        %v1216 = vpop.xlane.xlu0 %1215
        %v1217 = vsel %vm862, %v1201, 0.0
        %1218 = vadd.xlane.f32.xlu0 %v1217
        %v1219 = vpop.xlane.xlu0 %1218
        %v1220 = vsel %vm862, %v1203, 0.0
        %1221 = vadd.xlane.f32.xlu0 %v1220
        %v1222 = vpop.xlane.xlu0 %1221
        %v1223 = vsel %vm862, %v1205, 0.0
        %1224 = vadd.xlane.f32.xlu0 %v1223
        %v1225 = vpop.xlane.xlu0 %1224
        %v1226 = vsel %vm862, %v1207, 0.0
        %1227 = vadd.xlane.f32.xlu0 %v1226
        %v1228 = vpop.xlane.xlu0 %1227
        %v1229 = vsel %vm862, %v1209, 0.0
        %1230 = vadd.xlane.f32.xlu0 %v1229
        %v1231 = vpop.xlane.xlu0 %1230
        %v1232 = vsel %vm862, %v1211, 0.0
        %1233 = vadd.xlane.f32.xlu0 %v1232
        %v1234 = vpop.xlane.xlu0 %1233
        %v1235 = vsel %vm862, %v1213, 0.0
        %1236 = vadd.xlane.f32.xlu0 %v1235
        %v1237 = vpop.xlane.xlu0 %1236
        %v1238 = vrcp.pop %v1216
        %v1239 = vrcp.pop %v1219
        %v1240 = vrcp.pop %v1222
        %v1241 = vrcp.pop %v1225
        %v1242 = vrcp.pop %v1228
        %v1243 = vrcp.pop %v1231
        %v1244 = vrcp.pop %v1234
        %v1245 = vrcp.pop %v1237
        %v1246 = vmul.f32 %v1199, %v1238
        %v1247 = vmul.f32 %v1201, %v1239
        %v1248 = vmul.f32 %v1203, %v1240
        %v1249 = vmul.f32 %v1205, %v1241
        %v1250 = vmul.f32 %v1207, %v1242
        %v1251 = vmul.f32 %v1209, %v1243
        %v1252 = vmul.f32 %v1211, %v1244
        %v1253 = vmul.f32 %v1213, %v1245
        %v1254 = vpack.c.bf16 %v1246, %v1246
        %v1255 = vpack.c.bf16 %v1247, %v1247
        %v1256 = vpack.c.bf16 %v1248, %v1248
        %v1257 = vpack.c.bf16 %v1249, %v1249
        %v1258 = vpack.c.bf16 %v1250, %v1250
        %v1259 = vpack.c.bf16 %v1251, %v1251
        %v1260 = vpack.c.bf16 %v1252, %v1252
        %v1261 = vpack.c.bf16 %v1253, %v1253
        %v1264 = vunpack.c.l.b16 %v1254
        %v1265 = vunpack.c.l.b16 %v1255
        %v1266 = vpack.c.b16 %v1265, %v1264
        %1267 = vrot.lane.b32.xlu0 %v749, 56
        %v1268 = vpop.permute.xlu0 %1267
        %v1271 = vsel %vm862, %v1266, 0
        %1273 = vmatpush.bf16.msra.mxu0 0
        %1274 = vmatpush.bf16.msra.mxu0 0
        %1275 = vmatpush.bf16.msra.mxu0 0
        %1276 = vmatpush.bf16.msra.mxu0 0
        %1277 = vmatpush.bf16.msra.mxu0 0
        %1278 = vmatpush.bf16.msra.mxu0 0
        %1279 = vmatpush.bf16.msra.mxu0 0
        %1280 = vmatpush.bf16.msra.mxu0 %v1268
        %1281 = vmatmul.bf16.gmra.mxu0 %v1271
        %v1282 = vpop.f32.mrf.mxu0
        %v1283 = vadd.f32 0.0, %v1282
        %v1284 = vpop.f32.mrf.mxu0
        %v1285 = vadd.f32 0.0, %v1284
        %1286 = vdwg.mxu0
        %v1289 = vunpack.c.l.b16 %v1256
        %v1290 = vunpack.c.l.b16 %v1257
        %v1291 = vpack.c.b16 %v1290, %v1289
        %1292 = vrot.lane.b32.xlu0 %v777, 56
        %v1293 = vpop.permute.xlu0 %1292
        %v1296 = vsel %vm862, %v1291, 0
        %1298 = vmatpush.bf16.msra.mxu0 0
        %1299 = vmatpush.bf16.msra.mxu0 0
        %1300 = vmatpush.bf16.msra.mxu0 0
        %1301 = vmatpush.bf16.msra.mxu0 0
        %1302 = vmatpush.bf16.msra.mxu0 0
        %1303 = vmatpush.bf16.msra.mxu0 0
        %1304 = vmatpush.bf16.msra.mxu0 0
        %1305 = vmatpush.bf16.msra.mxu0 %v1293
        %1306 = vmatmul.bf16.gmra.mxu0 %v1296
        %v1307 = vpop.f32.mrf.mxu0
        %v1308 = vadd.f32 0.0, %v1307
        %v1309 = vpop.f32.mrf.mxu0
        %v1310 = vadd.f32 0.0, %v1309
        %1311 = vdwg.mxu0
        %v1314 = vunpack.c.l.b16 %v1258
        %v1315 = vunpack.c.l.b16 %v1259
        %v1316 = vpack.c.b16 %v1315, %v1314
        %1317 = vrot.lane.b32.xlu0 %v804, 56
        %v1318 = vpop.permute.xlu0 %1317
        %v1321 = vsel %vm862, %v1316, 0
        %1323 = vmatpush.bf16.msra.mxu0 0
        %1324 = vmatpush.bf16.msra.mxu0 0
        %1325 = vmatpush.bf16.msra.mxu0 0
        %1326 = vmatpush.bf16.msra.mxu0 0
        %1327 = vmatpush.bf16.msra.mxu0 0
        %1328 = vmatpush.bf16.msra.mxu0 0
        %1329 = vmatpush.bf16.msra.mxu0 0
        %1330 = vmatpush.bf16.msra.mxu0 %v1318
        %1331 = vmatmul.bf16.gmra.mxu0 %v1321
        %v1332 = vpop.f32.mrf.mxu0
        %v1333 = vadd.f32 0.0, %v1332
        %v1334 = vpop.f32.mrf.mxu0
        %v1335 = vadd.f32 0.0, %v1334
        %1336 = vdwg.mxu0
        %v1339 = vunpack.c.l.b16 %v1260
        %v1340 = vunpack.c.l.b16 %v1261
        %v1341 = vpack.c.b16 %v1340, %v1339
        %1342 = vrot.lane.b32.xlu0 %v831, 56
        %v1343 = vpop.permute.xlu0 %1342
        %v1346 = vsel %vm862, %v1341, 0
        %1348 = vmatpush.bf16.msra.mxu0 0
        %1349 = vmatpush.bf16.msra.mxu0 0
        %1350 = vmatpush.bf16.msra.mxu0 0
        %1351 = vmatpush.bf16.msra.mxu0 0
        %1352 = vmatpush.bf16.msra.mxu0 0
        %1353 = vmatpush.bf16.msra.mxu0 0
        %1354 = vmatpush.bf16.msra.mxu0 0
        %1355 = vmatpush.bf16.msra.mxu0 %v1343
        %1356 = vmatmul.bf16.gmra.mxu0 %v1346
        %v1357 = vpop.f32.mrf.mxu0
        %v1358 = vadd.f32 0.0, %v1357
        %v1359 = vpop.f32.mrf.mxu0
        %v1360 = vadd.f32 0.0, %v1359
        %1361 = vdwg.mxu0
        %s1362 = scalar_lea.vmem [#allocation10], 32
        %v1363 = vld [vmem:[%s1362] sm:$0xff]
        %v1364 = vld [vmem:[%s1362 + $0x8] sm:$0xff]
        %1365 = vrot.lane.b32.xlu0 %v749, 112
        %v1366 = vpop.permute.xlu0 %1365
        %1367 = vrot.lane.b32.xlu0 %v749, 80
        %v1368 = vpop.permute.xlu0 %1367
        %v1370 = vsel %vm752, %v1366, 0
        %v1373 = vsel %vm752, %v1368, 0
        %1375 = vmatpush.bf16.xpose.msra.mxu0 0
        %1376 = vmatpush.bf16.xpose.msra.mxu0 0
        %1377 = vmatpush.bf16.xpose.msra.mxu0 0
        %1378 = vmatpush.bf16.xpose.msra.mxu0 0
        %1379 = vmatpush.bf16.xpose.msra.mxu0 0
        %1380 = vmatpush.bf16.xpose.msra.mxu0 0
        %1381 = vmatpush.bf16.xpose.msra.mxu0 0
        %1382 = vmatpush.bf16.xpose.msra.mxu0 %v1373
        %1383 = vmatmul.bf16.gmra.mxu0 %v1370
        %v1384 = vpop.f32.mrf.mxu0
        %v1385 = vadd.f32 %v1363, %v1384
        %v1386 = vpop.f32.mrf.mxu0
        %v1387 = vadd.f32 %v1364, %v1386
        %1388 = vdwg.mxu0
        %1389 = vrot.lane.b32.xlu0 %v777, 112
        %v1390 = vpop.permute.xlu0 %1389
        %1391 = vrot.lane.b32.xlu0 %v777, 80
        %v1392 = vpop.permute.xlu0 %1391
        %v1394 = vsel %vm752, %v1390, 0
        %v1397 = vsel %vm752, %v1392, 0
        %1399 = vmatpush.bf16.xpose.msra.mxu0 0
        %1400 = vmatpush.bf16.xpose.msra.mxu0 0
        %1401 = vmatpush.bf16.xpose.msra.mxu0 0
        %1402 = vmatpush.bf16.xpose.msra.mxu0 0
        %1403 = vmatpush.bf16.xpose.msra.mxu0 0
        %1404 = vmatpush.bf16.xpose.msra.mxu0 0
        %1405 = vmatpush.bf16.xpose.msra.mxu0 0
        %1406 = vmatpush.bf16.xpose.msra.mxu0 %v1397
        %1407 = vmatmul.bf16.gmra.mxu0 %v1394
        %v1408 = vpop.f32.mrf.mxu0
        %v1409 = vadd.f32 %v1363, %v1408
        %v1410 = vpop.f32.mrf.mxu0
        %v1411 = vadd.f32 %v1364, %v1410
        %1412 = vdwg.mxu0
        %1413 = vrot.lane.b32.xlu0 %v804, 112
        %v1414 = vpop.permute.xlu0 %1413
        %1415 = vrot.lane.b32.xlu0 %v804, 80
        %v1416 = vpop.permute.xlu0 %1415
        %v1418 = vsel %vm752, %v1414, 0
        %v1421 = vsel %vm752, %v1416, 0
        %1423 = vmatpush.bf16.xpose.msra.mxu0 0
        %1424 = vmatpush.bf16.xpose.msra.mxu0 0
        %1425 = vmatpush.bf16.xpose.msra.mxu0 0
        %1426 = vmatpush.bf16.xpose.msra.mxu0 0
        %1427 = vmatpush.bf16.xpose.msra.mxu0 0
        %1428 = vmatpush.bf16.xpose.msra.mxu0 0
        %1429 = vmatpush.bf16.xpose.msra.mxu0 0
        %1430 = vmatpush.bf16.xpose.msra.mxu0 %v1421
        %1431 = vmatmul.bf16.gmra.mxu0 %v1418
        %v1432 = vpop.f32.mrf.mxu0
        %v1433 = vadd.f32 %v1363, %v1432
        %v1434 = vpop.f32.mrf.mxu0
        %v1435 = vadd.f32 %v1364, %v1434
        %1436 = vdwg.mxu0
        %1437 = vrot.lane.b32.xlu0 %v831, 112
        %v1438 = vpop.permute.xlu0 %1437
        %1439 = vrot.lane.b32.xlu0 %v831, 80
        %v1440 = vpop.permute.xlu0 %1439
        %v1442 = vsel %vm752, %v1438, 0
        %v1445 = vsel %vm752, %v1440, 0
        %1447 = vmatpush.bf16.xpose.msra.mxu0 0
        %1448 = vmatpush.bf16.xpose.msra.mxu0 0
        %1449 = vmatpush.bf16.xpose.msra.mxu0 0
        %1450 = vmatpush.bf16.xpose.msra.mxu0 0
        %1451 = vmatpush.bf16.xpose.msra.mxu0 0
        %1452 = vmatpush.bf16.xpose.msra.mxu0 0
        %1453 = vmatpush.bf16.xpose.msra.mxu0 0
        %1454 = vmatpush.bf16.xpose.msra.mxu0 %v1445
        %1455 = vmatmul.bf16.gmra.mxu0 %v1442
        %v1456 = vpop.f32.mrf.mxu0
        %v1457 = vadd.f32 %v1363, %v1456
        %v1458 = vpop.f32.mrf.mxu0
        %v1459 = vadd.f32 %v1364, %v1458
        %1460 = vdwg.mxu0
        %v1461 = vadd.f32 %v1385, %v727
        %v1462 = vadd.f32 %v1387, %v728
        %v1463 = vadd.f32 %v1409, %v729
        %v1464 = vadd.f32 %v1411, %v730
        %v1465 = vadd.f32 %v1433, %v731
        %v1466 = vadd.f32 %v1435, %v732
        %v1467 = vadd.f32 %v1457, %v733
        %v1468 = vadd.f32 %v1459, %v734
        %v1469 = vsel %vm862, %v1461, -inf
        %1470 = vmax.xlane.f32.xlu0 %v1469
        %v1471 = vpop.xlane.xlu0 %1470
        %v1472 = vsel %vm862, %v1462, -inf
        %1473 = vmax.xlane.f32.xlu0 %v1472
        %v1474 = vpop.xlane.xlu0 %1473
        %v1475 = vsel %vm862, %v1463, -inf
        %1476 = vmax.xlane.f32.xlu0 %v1475
        %v1477 = vpop.xlane.xlu0 %1476
        %v1478 = vsel %vm862, %v1464, -inf
        %1479 = vmax.xlane.f32.xlu0 %v1478
        %v1480 = vpop.xlane.xlu0 %1479
        %v1481 = vsel %vm862, %v1465, -inf
        %1482 = vmax.xlane.f32.xlu0 %v1481
        %v1483 = vpop.xlane.xlu0 %1482
        %v1484 = vsel %vm862, %v1466, -inf
        %1485 = vmax.xlane.f32.xlu0 %v1484
        %v1486 = vpop.xlane.xlu0 %1485
        %v1487 = vsel %vm862, %v1467, -inf
        %1488 = vmax.xlane.f32.xlu0 %v1487
        %v1489 = vpop.xlane.xlu0 %1488
        %v1490 = vsel %vm862, %v1468, -inf
        %1491 = vmax.xlane.f32.xlu0 %v1490
        %v1492 = vpop.xlane.xlu0 %1491
        %v1493 = vsub.f32 %v1461, %v1471
        %v1494 = vsub.f32 %v1462, %v1474
        %v1495 = vsub.f32 %v1463, %v1477
        %v1496 = vsub.f32 %v1464, %v1480
        %v1497 = vsub.f32 %v1465, %v1483
        %v1498 = vsub.f32 %v1466, %v1486
        %v1499 = vsub.f32 %v1467, %v1489
        %v1500 = vsub.f32 %v1468, %v1492
        %v1501 = vmul.f32 %v1493, 1.442695
        %v1502 = vpow.pop %v1501
        %v1503 = vmul.f32 %v1494, 1.442695
        %v1504 = vpow.pop %v1503
        %v1505 = vmul.f32 %v1495, 1.442695
        %v1506 = vpow.pop %v1505
        %v1507 = vmul.f32 %v1496, 1.442695
        %v1508 = vpow.pop %v1507
        %v1509 = vmul.f32 %v1497, 1.442695
        %v1510 = vpow.pop %v1509
        %v1511 = vmul.f32 %v1498, 1.442695
        %v1512 = vpow.pop %v1511
        %v1513 = vmul.f32 %v1499, 1.442695
        %v1514 = vpow.pop %v1513
        %v1515 = vmul.f32 %v1500, 1.442695
        %v1516 = vpow.pop %v1515
        %v1517 = vsel %vm862, %v1502, 0.0
        %1518 = vadd.xlane.f32.xlu0 %v1517
        %v1519 = vpop.xlane.xlu0 %1518
        %v1520 = vsel %vm862, %v1504, 0.0
        %1521 = vadd.xlane.f32.xlu0 %v1520
        %v1522 = vpop.xlane.xlu0 %1521
        %v1523 = vsel %vm862, %v1506, 0.0
        %1524 = vadd.xlane.f32.xlu0 %v1523
        %v1525 = vpop.xlane.xlu0 %1524
        %v1526 = vsel %vm862, %v1508, 0.0
        %1527 = vadd.xlane.f32.xlu0 %v1526
        %v1528 = vpop.xlane.xlu0 %1527
        %v1529 = vsel %vm862, %v1510, 0.0
        %1530 = vadd.xlane.f32.xlu0 %v1529
        %v1531 = vpop.xlane.xlu0 %1530
        %v1532 = vsel %vm862, %v1512, 0.0
        %1533 = vadd.xlane.f32.xlu0 %v1532
        %v1534 = vpop.xlane.xlu0 %1533
        %v1535 = vsel %vm862, %v1514, 0.0
        %1536 = vadd.xlane.f32.xlu0 %v1535
        %v1537 = vpop.xlane.xlu0 %1536
        %v1538 = vsel %vm862, %v1516, 0.0
        %1539 = vadd.xlane.f32.xlu0 %v1538
        %v1540 = vpop.xlane.xlu0 %1539
        %v1541 = vrcp.pop %v1519
        %v1542 = vrcp.pop %v1522
        %v1543 = vrcp.pop %v1525
        %v1544 = vrcp.pop %v1528
        %v1545 = vrcp.pop %v1531
        %v1546 = vrcp.pop %v1534
        %v1547 = vrcp.pop %v1537
        %v1548 = vrcp.pop %v1540
        %v1549 = vmul.f32 %v1502, %v1541
        %v1550 = vmul.f32 %v1504, %v1542
        %v1551 = vmul.f32 %v1506, %v1543
        %v1552 = vmul.f32 %v1508, %v1544
        %v1553 = vmul.f32 %v1510, %v1545
        %v1554 = vmul.f32 %v1512, %v1546
        %v1555 = vmul.f32 %v1514, %v1547
        %v1556 = vmul.f32 %v1516, %v1548
        %v1557 = vpack.c.bf16 %v1549, %v1549
        %v1558 = vpack.c.bf16 %v1550, %v1550
        %v1559 = vpack.c.bf16 %v1551, %v1551
        %v1560 = vpack.c.bf16 %v1552, %v1552
        %v1561 = vpack.c.bf16 %v1553, %v1553
        %v1562 = vpack.c.bf16 %v1554, %v1554
        %v1563 = vpack.c.bf16 %v1555, %v1555
        %v1564 = vpack.c.bf16 %v1556, %v1556
        %v1567 = vunpack.c.l.b16 %v1557
        %v1568 = vunpack.c.l.b16 %v1558
        %v1569 = vpack.c.b16 %v1568, %v1567
        %1570 = vrot.lane.b32.xlu0 %v749, 48
        %v1571 = vpop.permute.xlu0 %1570
        %v1574 = vsel %vm862, %v1569, 0
        %1576 = vmatpush.bf16.msra.mxu0 0
        %1577 = vmatpush.bf16.msra.mxu0 0
        %1578 = vmatpush.bf16.msra.mxu0 0
        %1579 = vmatpush.bf16.msra.mxu0 0
        %1580 = vmatpush.bf16.msra.mxu0 0
        %1581 = vmatpush.bf16.msra.mxu0 0
        %1582 = vmatpush.bf16.msra.mxu0 0
        %1583 = vmatpush.bf16.msra.mxu0 %v1571
        %1584 = vmatmul.bf16.gmra.mxu0 %v1574
        %v1585 = vpop.f32.mrf.mxu0
        %v1586 = vadd.f32 0.0, %v1585
        %v1587 = vpop.f32.mrf.mxu0
        %v1588 = vadd.f32 0.0, %v1587
        %1589 = vdwg.mxu0
        %v1592 = vunpack.c.l.b16 %v1559
        %v1593 = vunpack.c.l.b16 %v1560
        %v1594 = vpack.c.b16 %v1593, %v1592
        %1595 = vrot.lane.b32.xlu0 %v777, 48
        %v1596 = vpop.permute.xlu0 %1595
        %v1599 = vsel %vm862, %v1594, 0
        %1601 = vmatpush.bf16.msra.mxu0 0
        %1602 = vmatpush.bf16.msra.mxu0 0
        %1603 = vmatpush.bf16.msra.mxu0 0
        %1604 = vmatpush.bf16.msra.mxu0 0
        %1605 = vmatpush.bf16.msra.mxu0 0
        %1606 = vmatpush.bf16.msra.mxu0 0
        %1607 = vmatpush.bf16.msra.mxu0 0
        %1608 = vmatpush.bf16.msra.mxu0 %v1596
        %1609 = vmatmul.bf16.gmra.mxu0 %v1599
        %v1610 = vpop.f32.mrf.mxu0
        %v1611 = vadd.f32 0.0, %v1610
        %v1612 = vpop.f32.mrf.mxu0
        %v1613 = vadd.f32 0.0, %v1612
        %1614 = vdwg.mxu0
        %v1617 = vunpack.c.l.b16 %v1561
        %v1618 = vunpack.c.l.b16 %v1562
        %v1619 = vpack.c.b16 %v1618, %v1617
        %1620 = vrot.lane.b32.xlu0 %v804, 48
        %v1621 = vpop.permute.xlu0 %1620
        %v1624 = vsel %vm862, %v1619, 0
        %1626 = vmatpush.bf16.msra.mxu0 0
        %1627 = vmatpush.bf16.msra.mxu0 0
        %1628 = vmatpush.bf16.msra.mxu0 0
        %1629 = vmatpush.bf16.msra.mxu0 0
        %1630 = vmatpush.bf16.msra.mxu0 0
        %1631 = vmatpush.bf16.msra.mxu0 0
        %1632 = vmatpush.bf16.msra.mxu0 0
        %1633 = vmatpush.bf16.msra.mxu0 %v1621
        %1634 = vmatmul.bf16.gmra.mxu0 %v1624
        %v1635 = vpop.f32.mrf.mxu0
        %v1636 = vadd.f32 0.0, %v1635
        %v1637 = vpop.f32.mrf.mxu0
        %v1638 = vadd.f32 0.0, %v1637
        %1639 = vdwg.mxu0
        %v1642 = vunpack.c.l.b16 %v1563
        %v1643 = vunpack.c.l.b16 %v1564
        %v1644 = vpack.c.b16 %v1643, %v1642
        %1645 = vrot.lane.b32.xlu0 %v831, 48
        %v1646 = vpop.permute.xlu0 %1645
        %v1649 = vsel %vm862, %v1644, 0
        %1651 = vmatpush.bf16.msra.mxu0 0
        %1652 = vmatpush.bf16.msra.mxu0 0
        %1653 = vmatpush.bf16.msra.mxu0 0
        %1654 = vmatpush.bf16.msra.mxu0 0
        %1655 = vmatpush.bf16.msra.mxu0 0
        %1656 = vmatpush.bf16.msra.mxu0 0
        %1657 = vmatpush.bf16.msra.mxu0 0
        %1658 = vmatpush.bf16.msra.mxu0 %v1646
        %1659 = vmatmul.bf16.gmra.mxu0 %v1649
        %v1660 = vpop.f32.mrf.mxu0
        %v1661 = vadd.f32 0.0, %v1660
        %v1662 = vpop.f32.mrf.mxu0
        %v1663 = vadd.f32 0.0, %v1662
        %1664 = vdwg.mxu0
        %s1665 = scalar_lea.vmem [#allocation10], 48
        %v1666 = vld [vmem:[%s1665] sm:$0xff]
        %v1667 = vld [vmem:[%s1665 + $0x8] sm:$0xff]
        %1668 = vrot.lane.b32.xlu0 %v749, 104
        %v1669 = vpop.permute.xlu0 %1668
        %1670 = vrot.lane.b32.xlu0 %v749, 72
        %v1671 = vpop.permute.xlu0 %1670
        %v1673 = vsel %vm752, %v1669, 0
        %v1676 = vsel %vm752, %v1671, 0
        %1678 = vmatpush.bf16.xpose.msra.mxu0 0
        %1679 = vmatpush.bf16.xpose.msra.mxu0 0
        %1680 = vmatpush.bf16.xpose.msra.mxu0 0
        %1681 = vmatpush.bf16.xpose.msra.mxu0 0
        %1682 = vmatpush.bf16.xpose.msra.mxu0 0
        %1683 = vmatpush.bf16.xpose.msra.mxu0 0
        %1684 = vmatpush.bf16.xpose.msra.mxu0 0
        %1685 = vmatpush.bf16.xpose.msra.mxu0 %v1676
        %1686 = vmatmul.bf16.gmra.mxu0 %v1673
        %v1687 = vpop.f32.mrf.mxu0
        %v1688 = vadd.f32 %v1666, %v1687
        %v1689 = vpop.f32.mrf.mxu0
        %v1690 = vadd.f32 %v1667, %v1689
        %1691 = vdwg.mxu0
        %1692 = vrot.lane.b32.xlu0 %v777, 104
        %v1693 = vpop.permute.xlu0 %1692
        %1694 = vrot.lane.b32.xlu0 %v777, 72
        %v1695 = vpop.permute.xlu0 %1694
        %v1697 = vsel %vm752, %v1693, 0
        %v1700 = vsel %vm752, %v1695, 0
        %1702 = vmatpush.bf16.xpose.msra.mxu0 0
        %1703 = vmatpush.bf16.xpose.msra.mxu0 0
        %1704 = vmatpush.bf16.xpose.msra.mxu0 0
        %1705 = vmatpush.bf16.xpose.msra.mxu0 0
        %1706 = vmatpush.bf16.xpose.msra.mxu0 0
        %1707 = vmatpush.bf16.xpose.msra.mxu0 0
        %1708 = vmatpush.bf16.xpose.msra.mxu0 0
        %1709 = vmatpush.bf16.xpose.msra.mxu0 %v1700
        %1710 = vmatmul.bf16.gmra.mxu0 %v1697
        %v1711 = vpop.f32.mrf.mxu0
        %v1712 = vadd.f32 %v1666, %v1711
        %v1713 = vpop.f32.mrf.mxu0
        %v1714 = vadd.f32 %v1667, %v1713
        %1715 = vdwg.mxu0
        %1716 = vrot.lane.b32.xlu0 %v804, 104
        %v1717 = vpop.permute.xlu0 %1716
        %1718 = vrot.lane.b32.xlu0 %v804, 72
        %v1719 = vpop.permute.xlu0 %1718
        %v1721 = vsel %vm752, %v1717, 0
        %v1724 = vsel %vm752, %v1719, 0
        %1726 = vmatpush.bf16.xpose.msra.mxu0 0
        %1727 = vmatpush.bf16.xpose.msra.mxu0 0
        %1728 = vmatpush.bf16.xpose.msra.mxu0 0
        %1729 = vmatpush.bf16.xpose.msra.mxu0 0
        %1730 = vmatpush.bf16.xpose.msra.mxu0 0
        %1731 = vmatpush.bf16.xpose.msra.mxu0 0
        %1732 = vmatpush.bf16.xpose.msra.mxu0 0
        %1733 = vmatpush.bf16.xpose.msra.mxu0 %v1724
        %1734 = vmatmul.bf16.gmra.mxu0 %v1721
        %v1735 = vpop.f32.mrf.mxu0
        %v1736 = vadd.f32 %v1666, %v1735
        %v1737 = vpop.f32.mrf.mxu0
        %v1738 = vadd.f32 %v1667, %v1737
        %1739 = vdwg.mxu0
        %1740 = vrot.lane.b32.xlu0 %v831, 104
        %v1741 = vpop.permute.xlu0 %1740
        %1742 = vrot.lane.b32.xlu0 %v831, 72
        %v1743 = vpop.permute.xlu0 %1742
        %v1745 = vsel %vm752, %v1741, 0
        %v1748 = vsel %vm752, %v1743, 0
        %1750 = vmatpush.bf16.xpose.msra.mxu0 0
        %1751 = vmatpush.bf16.xpose.msra.mxu0 0
        %1752 = vmatpush.bf16.xpose.msra.mxu0 0
        %1753 = vmatpush.bf16.xpose.msra.mxu0 0
        %1754 = vmatpush.bf16.xpose.msra.mxu0 0
        %1755 = vmatpush.bf16.xpose.msra.mxu0 0
        %1756 = vmatpush.bf16.xpose.msra.mxu0 0
        %1757 = vmatpush.bf16.xpose.msra.mxu0 %v1748
        %1758 = vmatmul.bf16.gmra.mxu0 %v1745
        %v1759 = vpop.f32.mrf.mxu0
        %v1760 = vadd.f32 %v1666, %v1759
        %v1761 = vpop.f32.mrf.mxu0
        %v1762 = vadd.f32 %v1667, %v1761
        %1763 = vdwg.mxu0
        %v1764 = vadd.f32 %v1688, %v727
        %v1765 = vadd.f32 %v1690, %v728
        %v1766 = vadd.f32 %v1712, %v729
        %v1767 = vadd.f32 %v1714, %v730
        %v1768 = vadd.f32 %v1736, %v731
        %v1769 = vadd.f32 %v1738, %v732
        %v1770 = vadd.f32 %v1760, %v733
        %v1771 = vadd.f32 %v1762, %v734
        %v1772 = vsel %vm862, %v1764, -inf
        %1773 = vmax.xlane.f32.xlu0 %v1772
        %v1774 = vpop.xlane.xlu0 %1773
        %v1775 = vsel %vm862, %v1765, -inf
        %1776 = vmax.xlane.f32.xlu0 %v1775
        %v1777 = vpop.xlane.xlu0 %1776
        %v1778 = vsel %vm862, %v1766, -inf
        %1779 = vmax.xlane.f32.xlu0 %v1778
        %v1780 = vpop.xlane.xlu0 %1779
        %v1781 = vsel %vm862, %v1767, -inf
        %1782 = vmax.xlane.f32.xlu0 %v1781
        %v1783 = vpop.xlane.xlu0 %1782
        %v1784 = vsel %vm862, %v1768, -inf
        %1785 = vmax.xlane.f32.xlu0 %v1784
        %v1786 = vpop.xlane.xlu0 %1785
        %v1787 = vsel %vm862, %v1769, -inf
        %1788 = vmax.xlane.f32.xlu0 %v1787
        %v1789 = vpop.xlane.xlu0 %1788
        %v1790 = vsel %vm862, %v1770, -inf
        %1791 = vmax.xlane.f32.xlu0 %v1790
        %v1792 = vpop.xlane.xlu0 %1791
        %v1793 = vsel %vm862, %v1771, -inf
        %1794 = vmax.xlane.f32.xlu0 %v1793
        %v1795 = vpop.xlane.xlu0 %1794
        %v1796 = vsub.f32 %v1764, %v1774
        %v1797 = vsub.f32 %v1765, %v1777
        %v1798 = vsub.f32 %v1766, %v1780
        %v1799 = vsub.f32 %v1767, %v1783
        %v1800 = vsub.f32 %v1768, %v1786
        %v1801 = vsub.f32 %v1769, %v1789
        %v1802 = vsub.f32 %v1770, %v1792
        %v1803 = vsub.f32 %v1771, %v1795
        %v1804 = vmul.f32 %v1796, 1.442695
        %v1805 = vpow.pop %v1804
        %v1806 = vmul.f32 %v1797, 1.442695
        %v1807 = vpow.pop %v1806
        %v1808 = vmul.f32 %v1798, 1.442695
        %v1809 = vpow.pop %v1808
        %v1810 = vmul.f32 %v1799, 1.442695
        %v1811 = vpow.pop %v1810
        %v1812 = vmul.f32 %v1800, 1.442695
        %v1813 = vpow.pop %v1812
        %v1814 = vmul.f32 %v1801, 1.442695
        %v1815 = vpow.pop %v1814
        %v1816 = vmul.f32 %v1802, 1.442695
        %v1817 = vpow.pop %v1816
        %v1818 = vmul.f32 %v1803, 1.442695
        %v1819 = vpow.pop %v1818
        %v1820 = vsel %vm862, %v1805, 0.0
        %1821 = vadd.xlane.f32.xlu0 %v1820
        %v1822 = vpop.xlane.xlu0 %1821
        %v1823 = vsel %vm862, %v1807, 0.0
        %1824 = vadd.xlane.f32.xlu0 %v1823
        %v1825 = vpop.xlane.xlu0 %1824
        %v1826 = vsel %vm862, %v1809, 0.0
        %1827 = vadd.xlane.f32.xlu0 %v1826
        %v1828 = vpop.xlane.xlu0 %1827
        %v1829 = vsel %vm862, %v1811, 0.0
        %1830 = vadd.xlane.f32.xlu0 %v1829
        %v1831 = vpop.xlane.xlu0 %1830
        %v1832 = vsel %vm862, %v1813, 0.0
        %1833 = vadd.xlane.f32.xlu0 %v1832
        %v1834 = vpop.xlane.xlu0 %1833
        %v1835 = vsel %vm862, %v1815, 0.0
        %1836 = vadd.xlane.f32.xlu0 %v1835
        %v1837 = vpop.xlane.xlu0 %1836
        %v1838 = vsel %vm862, %v1817, 0.0
        %1839 = vadd.xlane.f32.xlu0 %v1838
        %v1840 = vpop.xlane.xlu0 %1839
        %v1841 = vsel %vm862, %v1819, 0.0
        %1842 = vadd.xlane.f32.xlu0 %v1841
        %v1843 = vpop.xlane.xlu0 %1842
        %v1844 = vrcp.pop %v1822
        %v1845 = vrcp.pop %v1825
        %v1846 = vrcp.pop %v1828
        %v1847 = vrcp.pop %v1831
        %v1848 = vrcp.pop %v1834
        %v1849 = vrcp.pop %v1837
        %v1850 = vrcp.pop %v1840
        %v1851 = vrcp.pop %v1843
        %v1852 = vmul.f32 %v1805, %v1844
        %v1853 = vmul.f32 %v1807, %v1845
        %v1854 = vmul.f32 %v1809, %v1846
        %v1855 = vmul.f32 %v1811, %v1847
        %v1856 = vmul.f32 %v1813, %v1848
        %v1857 = vmul.f32 %v1815, %v1849
        %v1858 = vmul.f32 %v1817, %v1850
        %v1859 = vmul.f32 %v1819, %v1851
        %v1860 = vpack.c.bf16 %v1852, %v1852
        %v1861 = vpack.c.bf16 %v1853, %v1853
        %v1862 = vpack.c.bf16 %v1854, %v1854
        %v1863 = vpack.c.bf16 %v1855, %v1855
        %v1864 = vpack.c.bf16 %v1856, %v1856
        %v1865 = vpack.c.bf16 %v1857, %v1857
        %v1866 = vpack.c.bf16 %v1858, %v1858
        %v1867 = vpack.c.bf16 %v1859, %v1859
        %v1870 = vunpack.c.l.b16 %v1860
        %v1871 = vunpack.c.l.b16 %v1861
        %v1872 = vpack.c.b16 %v1871, %v1870
        %1873 = vrot.lane.b32.xlu0 %v749, 40
        %v1874 = vpop.permute.xlu0 %1873
        %v1877 = vsel %vm862, %v1872, 0
        %1879 = vmatpush.bf16.msra.mxu0 0
        %1880 = vmatpush.bf16.msra.mxu0 0
        %1881 = vmatpush.bf16.msra.mxu0 0
        %1882 = vmatpush.bf16.msra.mxu0 0
        %1883 = vmatpush.bf16.msra.mxu0 0
        %1884 = vmatpush.bf16.msra.mxu0 0
        %1885 = vmatpush.bf16.msra.mxu0 0
        %1886 = vmatpush.bf16.msra.mxu0 %v1874
        %1887 = vmatmul.bf16.gmra.mxu0 %v1877
        %v1888 = vpop.f32.mrf.mxu0
        %v1889 = vadd.f32 0.0, %v1888
        %v1890 = vpop.f32.mrf.mxu0
        %v1891 = vadd.f32 0.0, %v1890
        %1892 = vdwg.mxu0
        %v1895 = vunpack.c.l.b16 %v1862
        %v1896 = vunpack.c.l.b16 %v1863
        %v1897 = vpack.c.b16 %v1896, %v1895
        %1898 = vrot.lane.b32.xlu0 %v777, 40
        %v1899 = vpop.permute.xlu0 %1898
        %v1902 = vsel %vm862, %v1897, 0
        %1904 = vmatpush.bf16.msra.mxu0 0
        %1905 = vmatpush.bf16.msra.mxu0 0
        %1906 = vmatpush.bf16.msra.mxu0 0
        %1907 = vmatpush.bf16.msra.mxu0 0
        %1908 = vmatpush.bf16.msra.mxu0 0
        %1909 = vmatpush.bf16.msra.mxu0 0
        %1910 = vmatpush.bf16.msra.mxu0 0
        %1911 = vmatpush.bf16.msra.mxu0 %v1899
        %1912 = vmatmul.bf16.gmra.mxu0 %v1902
        %v1913 = vpop.f32.mrf.mxu0
        %v1914 = vadd.f32 0.0, %v1913
        %v1915 = vpop.f32.mrf.mxu0
        %v1916 = vadd.f32 0.0, %v1915
        %1917 = vdwg.mxu0
        %v1920 = vunpack.c.l.b16 %v1864
        %v1921 = vunpack.c.l.b16 %v1865
        %v1922 = vpack.c.b16 %v1921, %v1920
        %1923 = vrot.lane.b32.xlu0 %v804, 40
        %v1924 = vpop.permute.xlu0 %1923
        %v1927 = vsel %vm862, %v1922, 0
        %1929 = vmatpush.bf16.msra.mxu0 0
        %1930 = vmatpush.bf16.msra.mxu0 0
        %1931 = vmatpush.bf16.msra.mxu0 0
        %1932 = vmatpush.bf16.msra.mxu0 0
        %1933 = vmatpush.bf16.msra.mxu0 0
        %1934 = vmatpush.bf16.msra.mxu0 0
        %1935 = vmatpush.bf16.msra.mxu0 0
        %1936 = vmatpush.bf16.msra.mxu0 %v1924
        %1937 = vmatmul.bf16.gmra.mxu0 %v1927
        %v1938 = vpop.f32.mrf.mxu0
        %v1939 = vadd.f32 0.0, %v1938
        %v1940 = vpop.f32.mrf.mxu0
        %v1941 = vadd.f32 0.0, %v1940
        %1942 = vdwg.mxu0
        %v1945 = vunpack.c.l.b16 %v1866
        %v1946 = vunpack.c.l.b16 %v1867
        %v1947 = vpack.c.b16 %v1946, %v1945
        %1948 = vrot.lane.b32.xlu0 %v831, 40
        %v1949 = vpop.permute.xlu0 %1948
        %v1952 = vsel %vm862, %v1947, 0
        %1954 = vmatpush.bf16.msra.mxu0 0
        %1955 = vmatpush.bf16.msra.mxu0 0
        %1956 = vmatpush.bf16.msra.mxu0 0
        %1957 = vmatpush.bf16.msra.mxu0 0
        %1958 = vmatpush.bf16.msra.mxu0 0
        %1959 = vmatpush.bf16.msra.mxu0 0
        %1960 = vmatpush.bf16.msra.mxu0 0
        %1961 = vmatpush.bf16.msra.mxu0 %v1949
        %1962 = vmatmul.bf16.gmra.mxu0 %v1952
        %v1963 = vpop.f32.mrf.mxu0
        %v1964 = vadd.f32 0.0, %v1963
        %v1965 = vpop.f32.mrf.mxu0
        %v1966 = vadd.f32 0.0, %v1965
        %1967 = vdwg.mxu0
        %1976 = vrot.lane.b32.xlu0 %v1283, 8
        %v1977 = vpop.permute.xlu0 %1976
        %1978 = vrot.lane.b32.xlu0 %v1285, 8
        %v1979 = vpop.permute.xlu0 %1978
        %1980 = vrot.lane.b32.xlu0 %v1308, 8
        %v1981 = vpop.permute.xlu0 %1980
        %1982 = vrot.lane.b32.xlu0 %v1310, 8
        %v1983 = vpop.permute.xlu0 %1982
        %1984 = vrot.lane.b32.xlu0 %v1333, 8
        %v1985 = vpop.permute.xlu0 %1984
        %1986 = vrot.lane.b32.xlu0 %v1335, 8
        %v1987 = vpop.permute.xlu0 %1986
        %1988 = vrot.lane.b32.xlu0 %v1358, 8
        %v1989 = vpop.permute.xlu0 %1988
        %1990 = vrot.lane.b32.xlu0 %v1360, 8
        %v1991 = vpop.permute.xlu0 %1990
        %2008 = vrot.lane.b32.xlu0 %v1586, 16
        %v2009 = vpop.permute.xlu0 %2008
        %2010 = vrot.lane.b32.xlu0 %v1588, 16
        %v2011 = vpop.permute.xlu0 %2010
        %2012 = vrot.lane.b32.xlu0 %v1611, 16
        %v2013 = vpop.permute.xlu0 %2012
        %2014 = vrot.lane.b32.xlu0 %v1613, 16
        %v2015 = vpop.permute.xlu0 %2014
        %2016 = vrot.lane.b32.xlu0 %v1636, 16
        %v2017 = vpop.permute.xlu0 %2016
        %2018 = vrot.lane.b32.xlu0 %v1638, 16
        %v2019 = vpop.permute.xlu0 %2018
        %2020 = vrot.lane.b32.xlu0 %v1661, 16
        %v2021 = vpop.permute.xlu0 %2020
        %2022 = vrot.lane.b32.xlu0 %v1663, 16
        %v2023 = vpop.permute.xlu0 %2022
        %2040 = vrot.lane.b32.xlu0 %v1889, 24
        %v2041 = vpop.permute.xlu0 %2040
        %2042 = vrot.lane.b32.xlu0 %v1891, 24
        %v2043 = vpop.permute.xlu0 %2042
        %2044 = vrot.lane.b32.xlu0 %v1914, 24
        %v2045 = vpop.permute.xlu0 %2044
        %2046 = vrot.lane.b32.xlu0 %v1916, 24
        %v2047 = vpop.permute.xlu0 %2046
        %2048 = vrot.lane.b32.xlu0 %v1939, 24
        %v2049 = vpop.permute.xlu0 %2048
        %2050 = vrot.lane.b32.xlu0 %v1941, 24
        %v2051 = vpop.permute.xlu0 %2050
        %2052 = vrot.lane.b32.xlu0 %v1964, 24
        %v2053 = vpop.permute.xlu0 %2052
        %2054 = vrot.lane.b32.xlu0 %v1966, 24
        %v2055 = vpop.permute.xlu0 %2054
        %v2064 = vsel %vm752, %v980, %v1977
        %v2065 = vsel %vm752, %v982, %v1979
        %v2066 = vsel %vm752, %v1005, %v1981
        %v2067 = vsel %vm752, %v1007, %v1983
        %v2068 = vsel %vm752, %v1030, %v1985
        %v2069 = vsel %vm752, %v1032, %v1987
        %v2070 = vsel %vm752, %v1055, %v1989
        %v2071 = vsel %vm752, %v1057, %v1991
        %v2072 = vsel %vm862, %v2064, %v2009
        %v2073 = vsel %vm862, %v2065, %v2011
        %v2074 = vsel %vm862, %v2066, %v2013
        %v2075 = vsel %vm862, %v2067, %v2015
        %v2076 = vsel %vm862, %v2068, %v2017
        %v2077 = vsel %vm862, %v2069, %v2019
        %v2078 = vsel %vm862, %v2070, %v2021
        %v2079 = vsel %vm862, %v2071, %v2023
        %vm2080 = vcmask 195584
        %v2081 = vsel %vm2080, %v2072, %v2041
        %v2082 = vsel %vm2080, %v2073, %v2043
        %v2083 = vsel %vm2080, %v2074, %v2045
        %v2084 = vsel %vm2080, %v2075, %v2047
        %v2085 = vsel %vm2080, %v2076, %v2049
        %v2086 = vsel %vm2080, %v2077, %v2051
        %v2087 = vsel %vm2080, %v2078, %v2053
        %v2088 = vsel %vm2080, %v2079, %v2055
        %v2089 = vpack.c.bf16 %v2082, %v2081
        %v2090 = vpack.c.bf16 %v2084, %v2083
        %v2091 = vpack.c.bf16 %v2086, %v2085
        %v2092 = vpack.c.bf16 %v2088, %v2087
        %v2093 = vld [vmem:[#allocation8] sm:$0xf]
        %v2094 = vld [vmem:[#allocation8 + $0x4] sm:$0xf]
        %v2095 = vld [vmem:[#allocation8 + $0x8] sm:$0xf]
        %v2096 = vld [vmem:[#allocation8 + $0xc] sm:$0xf]
        %v2097 = vld [vmem:[%s6] sm:$0x1]
        %v2099 = vperm.slane %v2097, 0
        %v2105 = vunpack.c.l.b16 %v2093
        %v2106 = vunpack.c.l.b16 %v2094
        %v2107 = vunpack.c.l.b16 %v2095
        %v2108 = vunpack.c.l.b16 %v2096
        %v2109 = vpack.c.b16 %v2106, %v2105
        %v2110 = vpack.c.b16 %v2108, %v2107
        %v2114 = vsel %vm454, %v2089, 0
        %v2117 = vsel %vm454, %v2090, 0
        %v2120 = vsel %vm454, %v2091, 0
        %v2123 = vsel %vm454, %v2092, 0
        %2125 = vmatpush.bf16.msra.mxu0 0
        %2126 = vmatpush.bf16.msra.mxu0 0
        %2127 = vmatpush.bf16.msra.mxu0 0
        %2128 = vmatpush.bf16.msra.mxu0 0
        %2129 = vmatpush.bf16.msra.mxu0 0
        %2130 = vmatpush.bf16.msra.mxu0 0
        %2131 = vmatpush.bf16.msra.mxu0 %v2110
        %2132 = vmatpush.bf16.msra.mxu0 %v2109
        %2133 = vmatmul.bf16.gmra.mxu0 %v2114
        %v2134 = vpop.f32.mrf.mxu0
        %v2135 = vadd.f32 %v2099, %v2134
        %v2136 = vpop.f32.mrf.mxu0
        %v2137 = vadd.f32 %v2099, %v2136
        %2138 = vmatmul.bf16.gmra.mxu0 %v2117
        %v2139 = vpop.f32.mrf.mxu0
        %v2140 = vadd.f32 %v2099, %v2139
        %v2141 = vpop.f32.mrf.mxu0
        %v2142 = vadd.f32 %v2099, %v2141
        %2143 = vmatmul.bf16.gmra.mxu0 %v2120
        %v2144 = vpop.f32.mrf.mxu0
        %v2145 = vadd.f32 %v2099, %v2144
        %v2146 = vpop.f32.mrf.mxu0
        %v2147 = vadd.f32 %v2099, %v2146
        %2148 = vmatmul.bf16.gmra.mxu0 %v2123
        %v2149 = vpop.f32.mrf.mxu0
        %v2150 = vadd.f32 %v2099, %v2149
        %v2151 = vpop.f32.mrf.mxu0
        %v2152 = vadd.f32 %v2099, %v2151
        %2153 = vdwg.mxu0
        %v2154 = vpack.c.bf16 %v2135, %v2135
        %v2155 = vpack.c.bf16 %v2137, %v2137
        %v2156 = vpack.c.bf16 %v2140, %v2140
        %v2157 = vpack.c.bf16 %v2142, %v2142
        %v2158 = vpack.c.bf16 %v2145, %v2145
        %v2159 = vpack.c.bf16 %v2147, %v2147
        %v2160 = vpack.c.bf16 %v2150, %v2150
        %v2161 = vpack.c.bf16 %v2152, %v2152
        %vm2162 = vcmask 257024
        %2163 = vst.msk [vmem:[%s434] sm:$0xf] %vm2162, %v2154
        %2164 = vst.msk [vmem:[%s434 + $0x4] sm:$0xf] %vm2162, %v2155
        %2165 = vst.msk [vmem:[%s434 + $0x8] sm:$0xf] %vm2162, %v2156
        %2166 = vst.msk [vmem:[%s434 + $0xc] sm:$0xf] %vm2162, %v2157
        %2167 = vst.msk [vmem:[%s434 + $0x10] sm:$0xf] %vm2162, %v2158
        %2168 = vst.msk [vmem:[%s434 + $0x14] sm:$0xf] %vm2162, %v2159
        %2169 = vst.msk [vmem:[%s434 + $0x18] sm:$0xf] %vm2162, %v2160
        %2170 = vst.msk [vmem:[%s434 + $0x1c] sm:$0xf] %vm2162, %v2161
        %s2171 = sand.u32 %s231, 1
        %s2172 = scalar_lea.sflag [#allocation4], %s2171
        %s2173 = sand.u32 %s231, 1
        %s2174 = smul.addr %s2173, 32
        %s2175 = scalar_lea.vmem [#allocation13], %s2174
        // Predicated region
        $region81: #{tpu_custom_call.1} parent=55 // pred_check
          %p2176 = pneg %p241
        $region82: #{tpu_custom_call.1} parent=55 // pred_check_branch
          %2178 = sbr.rel (%p2176) target = $region84
        $region83: #{tpu_custom_call.1} parent=55 // pred_region
          %s2179 = smul.u32 4, %s29
          %2181 = vsyncadd %s2172, 0
          %s2182 = smul.addr %s2179, 2
          %s2183 = smul.addr %s2182, 4
          %s2184 = scalar_lea.hbm %s9, %s2183
          %s2185 = sshll.u32 %s2175, 4
          %s2186 = int_to_ptr.vmem [resolvable:$true] %s2185
          %s2187 = sshll.u32 %s2184, 4
          %s2188 = int_to_ptr.hbm [resolvable:$true] %s2187
          %2193 = dma.vmem_to_hbm [thread:$0]  %s2186, 512, %s2188, %s2172, 64, 64, 4
        $region84: #{tpu_custom_call.1} parent=55 // pred_fallthru
          _
      $region56: #{tpu_custom_call.1} parent=5 // pred_fallthru
        _
      %p2194 = scmp.le.s32.totalorder 2, %s24
      // Predicated region
      $region85: #{tpu_custom_call.1} parent=5 // pred_check
        %p2195 = pneg %p2194
      $region86: #{tpu_custom_call.1} parent=5 // pred_check_branch
        %2197 = sbr.rel (%p2195) target = $region88
      $region87: #{tpu_custom_call.1} parent=5 // pred_region
        %s2198 = ssub.s32 %s24, 2
        // Predicated region
        $region89: #{tpu_custom_call.1} parent=87 // pred_check
          %p2199 = pneg %p247
        $region90: #{tpu_custom_call.1} parent=87 // pred_check_branch
          %2201 = sbr.rel (%p2199) target = $region92
        $region91: #{tpu_custom_call.1} parent=87 // pred_region
          %s2202 = sand.u32 %s232, 1
          %s2203 = scalar_lea.sflag [#allocation4], %s2202
          %s2204 = sand.u32 %s232, 1
          %s2205 = smul.addr %s2204, 32
          %s2206 = scalar_lea.vmem [#allocation13], %s2205
          %2208 = dma.done %s2203, 512
        $region92: #{tpu_custom_call.1} parent=87 // pred_fallthru
          _
      $region88: #{tpu_custom_call.1} parent=5 // pred_fallthru
        _
    $region6: #{tpu_custom_call.1} parent=1 // loop_footer
      %s28 = sadd.s32 1, %s24
    $region7: #{tpu_custom_call.1} parent=1 // loop_footer_branch
      %23 = sbr.rel target = $region3
    $region8: #{tpu_custom_call.1} parent=1 // loop_exit
      _
    %2209 = vsyncpa [#allocation3], 1
    %s2210 = scalar_lea.sflag [#allocation3], 1
    %2211 = vsyncpa %s2210, 1
    %2212 = vsyncpa [#allocation6], 1
    %2213 = vsyncpa [#allocation9], 1
    %2214 = vsyncpa [#allocation12], 1
    %2215 = vsyncpa [#allocation4], 1
    %s2216 = scalar_lea.sflag [#allocation4], 1
    %2217 = vsyncpa %s2216, 1

</llo_original>
